<compile_context>
chip_gen: v6e
topology: v6e:2x2x1
jax: 0.10.0
libtpu: 0.0.40
codegen_flags: <defaults>
</compile_context>

<pallas_src>
import functools

import numpy as np
import jax
import jax.numpy as jnp
from jax import lax
from jax.experimental import pallas as pl
from jax.experimental.pallas import tpu as pltpu


def _round_up(x, m):
    return ((x + m - 1) // m) * m


def lstm_chunk_kernel(lens_ref, x_ref, wih_ref, whh_ref, b_ref,
                      y_ref, hN_ref, cN_ref,
                      gx_sc, h_sc, c_sc, *, Tc, Hp, unroll):
    """Runs Tc LSTM timesteps per grid step.

    Grid = (batch_chunks [parallel], time_chunks [arbitrary/sequential]).
    h/c recurrent state is carried in f32 VMEM scratch; h_n/c_n are written once at the
    last time chunk.  x/y blocks are time-major: (Tc, Bc, *).
    """
    t_chunk = pl.program_id(1)

    @pl.when(t_chunk == 0)
    def _():
        h_sc[...] = jnp.zeros_like(h_sc)
        c_sc[...] = jnp.zeros_like(c_sc)

    # ---- hoisted input projection: one large-M MXU matmul per time chunk -------------
    x = x_ref[...].astype(jnp.float32)                       # (Tc, Bc, Dp)
    xm = x.reshape(x.shape[0] * x.shape[1], x.shape[2])      # (Tc*Bc, Dp), layout no-op
    gx = jnp.dot(xm, wih_ref[...], preferred_element_type=jnp.float32) + b_ref[...]
    gx_sc[...] = gx.reshape(gx_sc.shape)                     # (Tc, Bc, 4*Hp)

    lens = lens_ref[...]                                     # (Bc, 1) int32
    w_hh = whh_ref[...]                                      # (Hp, 4*Hp) f32
    t0 = t_chunk * Tc

    def sigmoid(z):                                          # one EUP push per gate
        return 0.5 * (jnp.tanh(0.5 * z) + 1.0)

    def step_block(jb, carry):
        h, c = carry
        base = jb * unroll
        for u in range(unroll):                              # partial (manual) unroll
            j = base + u
            # serial recurrence matmul only: (Bc, Hp) @ (Hp, 4*Hp)
            gates = gx_sc[j] + jnp.dot(h, w_hh, preferred_element_type=jnp.float32)
            i_g = sigmoid(gates[:, 0 * Hp:1 * Hp])
            f_g = sigmoid(gates[:, 1 * Hp:2 * Hp])
            g_g = jnp.tanh(gates[:, 2 * Hp:3 * Hp])
            o_g = sigmoid(gates[:, 3 * Hp:4 * Hp])
            c_new = f_g * c + i_g * g_g
            h_new = o_g * jnp.tanh(c_new)
            # packed-sequence semantics: frozen state & zero output past sequence length
            mask = lens > (t0 + j)                           # (Bc, 1) bool
            y_ref[j] = jnp.where(mask, h_new, 0.0).astype(y_ref.dtype)
            h = jnp.where(mask, h_new, h)
            c = jnp.where(mask, c_new, c)
        return (h, c)

    h, c = lax.fori_loop(0, Tc // unroll, step_block, (h_sc[...], c_sc[...]))
    h_sc[...] = h
    c_sc[...] = c

    @pl.when(t_chunk == pl.num_programs(1) - 1)
    def _():
        hN_ref[...] = h.astype(hN_ref.dtype)
        cN_ref[...] = c.astype(cN_ref.dtype)


def prepare_lstm_weights(params):
    """Pad / lay out LSTM weights once (hoisted out of the per-call path)."""
    D = params["w_ih"].shape[0]
    H = params["w_hh"].shape[0]
    Dp = _round_up(max(D, 1), 128)
    Hp = _round_up(max(H, 1), 128)
    w_ih = params["w_ih"].astype(jnp.float32)                       # (D, 4H)
    w_hh = params["w_hh"].astype(jnp.float32)                       # (H, 4H)
    bias = (params["b_ih"] + params["b_hh"]).astype(jnp.float32)    # (4H,)
    w_ih_p = jnp.zeros((Dp, 4 * Hp), jnp.float32)
    w_hh_p = jnp.zeros((Hp, 4 * Hp), jnp.float32)
    b_p = jnp.zeros((1, 4 * Hp), jnp.float32)
    for g in range(4):                                              # i, f, g, o (PyTorch)
        w_ih_p = w_ih_p.at[:D, g * Hp:g * Hp + H].set(w_ih[:, g * H:(g + 1) * H])
        w_hh_p = w_hh_p.at[:H, g * Hp:g * Hp + H].set(w_hh[:, g * H:(g + 1) * H])
        b_p = b_p.at[0, g * Hp:g * Hp + H].set(bias[g * H:(g + 1) * H])
    return {"w_ih_p": w_ih_p, "w_hh_p": w_hh_p, "b_p": b_p,
            "D": D, "H": H, "Dp": Dp, "Hp": Hp}


def lstm_embedding_forward(sent_variable, sent_len, prepared):
    """sent_variable: [B, T, D] (batch-first); sent_len: np.ndarray [B] of ints."""
    B, T, D = sent_variable.shape
    H, Dp, Hp = prepared["H"], prepared["Dp"], prepared["Hp"]
    assert D == prepared["D"]
    dtype = sent_variable.dtype

    lens_np = np.asarray(sent_len).astype(np.int32)
    max_len = int(lens_np.max())

    # --- hardware-aligned tiling -------------------------------------------------------
    U = 8                                            # inner unroll factor
    Bp0 = _round_up(B, 8)
    Bc = min(64, Bp0)                                # batch rows per grid step
    Bp = _round_up(Bp0, Bc)
    Tc = min(64, _round_up(max_len, U))              # timesteps per grid step
    # keep the per-chunk projection scratch bounded (~<= 8 MiB)
    while Tc > U and Tc * Bc * 4 * Hp * 4 > (8 << 20):
        Tc -= U
    Tp = _round_up(max_len, Tc)                      # run only up to max(sent_len)

    # --- time-major padded input: (Tp, Bp, Dp) (transpose is free: we copy anyway) -----
    t_copy = min(T, Tp)
    x_p = jnp.zeros((Tp, Bp, Dp), dtype)
    x_p = x_p.at[:t_copy, :B, :D].set(
        jnp.transpose(sent_variable[:, :t_copy, :], (1, 0, 2)))

    lens_p = jnp.zeros((Bp, 1), jnp.int32).at[:B, 0].set(jnp.asarray(lens_np))

    # --- explicit VMEM budget (weights single-buffered, x/y blocks double-buffered) ----
    isz = jnp.dtype(dtype).itemsize
    need = ((Dp + Hp + 1) * 4 * Hp * 4                   # W_ih, W_hh, bias (f32, 1-buf)
            + 2 * Tc * Bc * (Dp + Hp) * isz              # x / y blocks (2-buffered)
            + Tc * Bc * 4 * Hp * 4                       # gx scratch
            + 4 * Bc * Hp * 4 + Bc * 8)                  # h/c scratch + hN/cN + lens
    vmem_limit = int(min(max(2 * need, 32 << 20), 100 << 20))

    kernel = functools.partial(lstm_chunk_kernel, Tc=Tc, Hp=Hp, unroll=U)

    y_p, h_n, c_n = pl.pallas_call(
        kernel,
        out_shape=(jax.ShapeDtypeStruct((Tp, Bp, Hp), dtype),
                   jax.ShapeDtypeStruct((Bp, Hp), jnp.float32),
                   jax.ShapeDtypeStruct((Bp, Hp), jnp.float32)),
        grid_spec=pltpu.PrefetchScalarGridSpec(
            num_scalar_prefetch=0,
            grid=(Bp // Bc, Tp // Tc),
            in_specs=[
                pl.BlockSpec((Bc, 1), lambda b, t: (b, 0)),              # lengths
                pl.BlockSpec((Tc, Bc, Dp), lambda b, t: (t, b, 0)),      # x (time-major)
                pl.BlockSpec((Dp, 4 * Hp), lambda b, t: (0, 0),          # W_ih (resident)
                             pipeline_mode=pl.Buffered(1)),
                pl.BlockSpec((Hp, 4 * Hp), lambda b, t: (0, 0),          # W_hh (resident)
                             pipeline_mode=pl.Buffered(1)),
                pl.BlockSpec((1, 4 * Hp), lambda b, t: (0, 0),           # bias (resident)
                             pipeline_mode=pl.Buffered(1)),
            ],
            out_specs=[
                pl.BlockSpec((Tc, Bc, Hp), lambda b, t: (t, b, 0)),      # y (time-major)
                pl.BlockSpec((Bc, Hp), lambda b, t: (b, 0)),             # h_n (resident)
                pl.BlockSpec((Bc, Hp), lambda b, t: (b, 0)),             # c_n (resident)
            ],
            scratch_shapes=[
                pltpu.VMEM((Tc, Bc, 4 * Hp), jnp.float32),               # gx projection
                pltpu.VMEM((Bc, Hp), jnp.float32),                       # h carry (f32)
                pltpu.VMEM((Bc, Hp), jnp.float32),                       # c carry (f32)
            ]),
        compiler_params=pltpu.CompilerParams(
            dimension_semantics=("parallel", "arbitrary"),
            vmem_limit_bytes=vmem_limit),
    )(lens_p, x_p, prepared["w_ih_p"], prepared["w_hh_p"], prepared["b_p"])

    # pad_packed_sequence pads only up to the longest sequence; strip alignment padding.
    sent_output = jnp.transpose(y_p[:max_len, :B, :H], (1, 0, 2))

    # `hidden` is returned in length-sorted (descending) order, as in the PyTorch module.
    idx_sort = jnp.asarray(np.argsort(-np.asarray(sent_len)))
    h_n_sorted = h_n[:B, :H][idx_sort][None].astype(dtype)   # [nlayers*ndir=1, B, H]
    c_n_sorted = c_n[:B, :H][idx_sort][None].astype(dtype)
    return sent_output, (h_n_sorted, c_n_sorted)


def lstm_reference(x, lens, w_ih, w_hh, bias):
    """Pure-JAX reference (lax.scan) for correctness checking."""
    B, T, D = x.shape
    H = w_hh.shape[0]
    lens = jnp.asarray(np.asarray(lens), jnp.int32)

    def step(carry, inp):
        h, c = carry
        x_t, t = inp
        gates = x_t @ w_ih + h @ w_hh + bias
        i = jax.nn.sigmoid(gates[:, :H])
        f = jax.nn.sigmoid(gates[:, H:2 * H])
        g = jnp.tanh(gates[:, 2 * H:3 * H])
        o = jax.nn.sigmoid(gates[:, 3 * H:])
        c_new = f * c + i * g
        h_new = o * jnp.tanh(c_new)
        m = (lens > t)[:, None]
        return ((jnp.where(m, h_new, h), jnp.where(m, c_new, c)),
                jnp.where(m, h_new, 0.0))

    (hN, cN), ys = lax.scan(step,
                            (jnp.zeros((B, H), jnp.float32),
                             jnp.zeros((B, H), jnp.float32)),
                            (jnp.transpose(x, (1, 0, 2)), jnp.arange(T)))
    return jnp.transpose(ys, (1, 0, 2)), hN, cN


def init_lstm_params(key, input_size, hidden_size):
    """PyTorch-style init: U(-1/sqrt(H), 1/sqrt(H)); weights stored transposed for x@W."""
    k = 1.0 / np.sqrt(hidden_size)
    k0, k1, k2, k3 = jax.random.split(key, 4)
    return {
        "w_ih": jax.random.uniform(k0, (input_size, 4 * hidden_size), jnp.float32, -k, k),
        "w_hh": jax.random.uniform(k1, (hidden_size, 4 * hidden_size), jnp.float32, -k, k),
        "b_ih": jax.random.uniform(k2, (4 * hidden_size,), jnp.float32, -k, k),
        "b_hh": jax.random.uniform(k3, (4 * hidden_size,), jnp.float32, -k, k),
    }


if __name__ == "__main__":
    B, T, D, H = 4, 8, 16, 32          # batch, seq len, input_size, hidden_size
    key = jax.random.PRNGKey(0)
    k_x, k_p = jax.random.split(key)

    sent_variable = jax.random.normal(k_x, (B, T, D), jnp.float32)
    sent_len = np.array([8, 5, 3, 7], dtype=np.int64)   # variable sequence lengths

    params = init_lstm_params(k_p, D, H)
    prepared = prepare_lstm_weights(params)             # built once, outside the fwd path

    sent_output, (h_n, c_n) = lstm_embedding_forward(sent_variable, sent_len, prepared)
    jax.block_until_ready((sent_output, h_n, c_n))

    # correctness check against pure-JAX reference
    bias = (params["b_ih"] + params["b_hh"]).reshape(1, 4 * H)
    y_ref, h_ref, c_ref = lstm_reference(sent_variable, sent_len,
                                         params["w_ih"], params["w_hh"], bias)
    max_len = int(np.max(sent_len))
    idx_sort = jnp.asarray(np.argsort(-sent_len))
    np.testing.assert_allclose(np.asarray(sent_output),
                               np.asarray(y_ref[:, :max_len]), rtol=1e-4, atol=1e-4)
    np.testing.assert_allclose(np.asarray(h_n[0]),
                               np.asarray(h_ref[idx_sort]), rtol=1e-4, atol=1e-4)
    np.testing.assert_allclose(np.asarray(c_n[0]),
                               np.asarray(c_ref[idx_sort]), rtol=1e-4, atol=1e-4)

    print("KERNEL_OK")
</pallas_src>

<mosaic_0001>
module attributes {stable_mosaic.version = 11 : i64} {
  func.func @lstm_chunk_kernel(%arg0: i32, %arg1: i32, %arg2: memref<8x1xi32, #tpu.memory_space<vmem>>, %arg3: memref<8x8x128xf32, #tpu.memory_space<vmem>>, %arg4: memref<128x512xf32, #tpu.memory_space<vmem>>, %arg5: memref<128x512xf32, #tpu.memory_space<vmem>>, %arg6: memref<1x512xf32, #tpu.memory_space<vmem>>, %arg7: memref<8x8x128xf32, #tpu.memory_space<vmem>>, %arg8: memref<8x128xf32, #tpu.memory_space<vmem>>, %arg9: memref<8x128xf32, #tpu.memory_space<vmem>>, %arg10: memref<8x8x512xf32, #tpu.memory_space<vmem>>, %arg11: memref<8x128xf32, #tpu.memory_space<vmem>>, %arg12: memref<8x128xf32, #tpu.memory_space<vmem>>) attributes {dimension_semantics = [#tpu.dimension_semantics<parallel>, #tpu.dimension_semantics<arbitrary>], iteration_bounds = array<i64: 1, 1>, scalar_prefetch = 0 : i64, scratch_operands = 3 : i64, tpu.core_type = #tpu.core_type<tc>, window_params = [{transform_indices = @transform_0, window_bounds = array<i64: 8, 1>}, {transform_indices = @transform_1, window_bounds = array<i64: 8, 8, 128>}, {pipeline_mode = #tpu.pipeline_mode<synchronous>, transform_indices = @transform_2, window_bounds = array<i64: 128, 512>}, {pipeline_mode = #tpu.pipeline_mode<synchronous>, transform_indices = @transform_3, window_bounds = array<i64: 128, 512>}, {pipeline_mode = #tpu.pipeline_mode<synchronous>, transform_indices = @transform_4, window_bounds = array<i64: 1, 512>}, {transform_indices = @transform_5, window_bounds = array<i64: 8, 8, 128>}, {transform_indices = @transform_6, window_bounds = array<i64: 8, 128>}, {transform_indices = @transform_7, window_bounds = array<i64: 8, 128>}]} {
    %c0_i32 = arith.constant 0 : i32
    %0 = arith.cmpi eq, %arg1, %c0_i32 : i32
    %1 = arith.extui %0 : i1 to i32
    %c0_i32_0 = arith.constant 0 : i32
    %2 = arith.cmpi ne, %1, %c0_i32_0 : i32
    scf.if %2 {
      %cst_148 = arith.constant 0.000000e+00 : f32
      %455 = vector.broadcast %cst_148 : f32 to vector<8x128xf32>
      %c0_149 = arith.constant 0 : index
      %c0_150 = arith.constant 0 : index
      %456 = vector.load %arg11[%c0_149, %c0_150] : memref<8x128xf32, #tpu.memory_space<vmem>>, vector<8x128xf32>
      tpu.vector_store %arg11[%c0_149, %c0_150], %455 {strides = array<i32>} : memref<8x128xf32, #tpu.memory_space<vmem>>, vector<8x128xf32>,
      %cst_151 = arith.constant 0.000000e+00 : f32
      %457 = vector.broadcast %cst_151 : f32 to vector<8x128xf32>
      %c0_152 = arith.constant 0 : index
      %c0_153 = arith.constant 0 : index
      %458 = vector.load %arg12[%c0_152, %c0_153] : memref<8x128xf32, #tpu.memory_space<vmem>>, vector<8x128xf32>
      tpu.vector_store %arg12[%c0_152, %c0_153], %457 {strides = array<i32>} : memref<8x128xf32, #tpu.memory_space<vmem>>, vector<8x128xf32>,
    } else {
    }
    %c0 = arith.constant 0 : index
    %c0_1 = arith.constant 0 : index
    %c0_2 = arith.constant 0 : index
    %3 = vector.load %arg3[%c0, %c0_1, %c0_2] : memref<8x8x128xf32, #tpu.memory_space<vmem>>, vector<8x8x128xf32>
    %4 = vector.shape_cast %3 : vector<8x8x128xf32> to vector<64x128xf32>
    %c0_3 = arith.constant 0 : index
    %c0_4 = arith.constant 0 : index
    %5 = vector.load %arg4[%c0_3, %c0_4] : memref<128x512xf32, #tpu.memory_space<vmem>>, vector<128x512xf32>
    %cst = arith.constant dense<0.000000e+00> : vector<64x512xf32>
    %6 = tpu.matmul %4, %5, %cst {dimension_numbers = #tpu.dot_dimension_numbers<[1], [0], [0], [1], [0, 0, 1, 1], [], []>} : vector<64x128xf32>, vector<128x512xf32>, vector<64x512xf32> -> vector<64x512xf32>
    %c0_5 = arith.constant 0 : index
    %c0_6 = arith.constant 0 : index
    %7 = vector.load %arg6[%c0_5, %c0_6] : memref<1x512xf32, #tpu.memory_space<vmem>>, vector<1x512xf32>
    %8 = vector.broadcast %7 : vector<1x512xf32> to vector<64x512xf32>
    %9 = arith.addf %6, %8 : vector<64x512xf32>
    %10 = vector.shape_cast %9 : vector<64x512xf32> to vector<8x8x512xf32>
    %c0_7 = arith.constant 0 : index
    %c0_8 = arith.constant 0 : index
    %c0_9 = arith.constant 0 : index
    %11 = vector.load %arg10[%c0_7, %c0_8, %c0_9] : memref<8x8x512xf32, #tpu.memory_space<vmem>>, vector<8x8x512xf32>
    tpu.vector_store %arg10[%c0_7, %c0_8, %c0_9], %10 {strides = array<i32>} : memref<8x8x512xf32, #tpu.memory_space<vmem>>, vector<8x8x512xf32>,
    %c0_10 = arith.constant 0 : index
    %c0_11 = arith.constant 0 : index
    %12 = vector.load %arg2[%c0_10, %c0_11] : memref<8x1xi32, #tpu.memory_space<vmem>>, vector<8x1xi32>
    %c0_12 = arith.constant 0 : index
    %c0_13 = arith.constant 0 : index
    %13 = vector.load %arg5[%c0_12, %c0_13] : memref<128x512xf32, #tpu.memory_space<vmem>>, vector<128x512xf32>
    %c8_i32 = arith.constant 8 : i32
    %14 = arith.muli %arg1, %c8_i32 : i32
    %c0_14 = arith.constant 0 : index
    %c0_15 = arith.constant 0 : index
    %15 = vector.load %arg11[%c0_14, %c0_15] : memref<8x128xf32, #tpu.memory_space<vmem>>, vector<8x128xf32>
    %c0_16 = arith.constant 0 : index
    %c0_17 = arith.constant 0 : index
    %16 = vector.load %arg12[%c0_16, %c0_17] : memref<8x128xf32, #tpu.memory_space<vmem>>, vector<8x128xf32>
    %c0_i32_18 = arith.constant 0 : i32
    %c8_i32_19 = arith.constant 8 : i32
    %17 = arith.muli %c0_i32_18, %c8_i32_19 : i32
    %c0_i32_20 = arith.constant 0 : i32
    %18 = arith.addi %17, %c0_i32_20 : i32
    %19 = arith.index_cast %18 : i32 to index
    %c0_21 = arith.constant 0 : index
    %c0_22 = arith.constant 0 : index
    %20 = vector.load %arg10[%19, %c0_21, %c0_22] : memref<8x8x512xf32, #tpu.memory_space<vmem>>, vector<1x8x512xf32>
    %21 = vector.shape_cast %20 : vector<1x8x512xf32> to vector<8x512xf32>
    %cst_23 = arith.constant dense<0.000000e+00> : vector<8x512xf32>
    %22 = tpu.matmul %15, %13, %cst_23 {dimension_numbers = #tpu.dot_dimension_numbers<[1], [0], [0], [1], [0, 0, 1, 1], [], []>} : vector<8x128xf32>, vector<128x512xf32>, vector<8x512xf32> -> vector<8x512xf32>
    %23 = arith.addf %21, %22 : vector<8x512xf32>
    %24 = vector.extract_strided_slice %23 {offsets = [0, 0], sizes = [8, 128], strides = [1, 1]} : vector<8x512xf32> to vector<8x128xf32>
    %cst_24 = arith.constant 5.000000e-01 : f32
    %25 = vector.broadcast %cst_24 : f32 to vector<8x128xf32>
    %26 = arith.mulf %25, %24 : vector<8x128xf32>
    %27 = math.tanh %26 : vector<8x128xf32>
    %cst_25 = arith.constant 1.000000e+00 : f32
    %28 = vector.broadcast %cst_25 : f32 to vector<8x128xf32>
    %29 = arith.addf %27, %28 : vector<8x128xf32>
    %cst_26 = arith.constant 5.000000e-01 : f32
    %30 = vector.broadcast %cst_26 : f32 to vector<8x128xf32>
    %31 = arith.mulf %30, %29 : vector<8x128xf32>
    %32 = vector.extract_strided_slice %23 {offsets = [0, 128], sizes = [8, 128], strides = [1, 1]} : vector<8x512xf32> to vector<8x128xf32>
    %cst_27 = arith.constant 5.000000e-01 : f32
    %33 = vector.broadcast %cst_27 : f32 to vector<8x128xf32>
    %34 = arith.mulf %33, %32 : vector<8x128xf32>
    %35 = math.tanh %34 : vector<8x128xf32>
    %cst_28 = arith.constant 1.000000e+00 : f32
    %36 = vector.broadcast %cst_28 : f32 to vector<8x128xf32>
    %37 = arith.addf %35, %36 : vector<8x128xf32>
    %cst_29 = arith.constant 5.000000e-01 : f32
    %38 = vector.broadcast %cst_29 : f32 to vector<8x128xf32>
    %39 = arith.mulf %38, %37 : vector<8x128xf32>
    %40 = vector.extract_strided_slice %23 {offsets = [0, 256], sizes = [8, 128], strides = [1, 1]} : vector<8x512xf32> to vector<8x128xf32>
    %41 = math.tanh %40 : vector<8x128xf32>
    %42 = vector.extract_strided_slice %23 {offsets = [0, 384], sizes = [8, 128], strides = [1, 1]} : vector<8x512xf32> to vector<8x128xf32>
    %cst_30 = arith.constant 5.000000e-01 : f32
    %43 = vector.broadcast %cst_30 : f32 to vector<8x128xf32>
    %44 = arith.mulf %43, %42 : vector<8x128xf32>
    %45 = math.tanh %44 : vector<8x128xf32>
    %cst_31 = arith.constant 1.000000e+00 : f32
    %46 = vector.broadcast %cst_31 : f32 to vector<8x128xf32>
    %47 = arith.addf %45, %46 : vector<8x128xf32>
    %cst_32 = arith.constant 5.000000e-01 : f32
    %48 = vector.broadcast %cst_32 : f32 to vector<8x128xf32>
    %49 = arith.mulf %48, %47 : vector<8x128xf32>
    %50 = arith.mulf %39, %16 : vector<8x128xf32>
    %51 = arith.mulf %31, %41 : vector<8x128xf32>
    %52 = arith.addf %50, %51 : vector<8x128xf32>
    %53 = math.tanh %52 : vector<8x128xf32>
    %54 = arith.mulf %49, %53 : vector<8x128xf32>
    %55 = arith.addi %14, %18 : i32
    %56 = vector.broadcast %55 : i32 to vector<8x1xi32>
    %57 = arith.cmpi sgt, %12, %56 : vector<8x1xi32>
    %cst_33 = arith.constant 0.000000e+00 : f32
    %58 = vector.shape_cast %57 : vector<8x1xi1> to vector<8x1xi1>
    %59 = vector.broadcast %58 : vector<8x1xi1> to vector<8x128xi1>
    %60 = vector.broadcast %cst_33 : f32 to vector<8x128xf32>
    %61 = arith.select %59, %54, %60 : vector<8x128xi1>, vector<8x128xf32>
    %62 = arith.index_cast %18 : i32 to index
    %c0_34 = arith.constant 0 : index
    %c0_35 = arith.constant 0 : index
    %63 = vector.load %arg7[%62, %c0_34, %c0_35] : memref<8x8x128xf32, #tpu.memory_space<vmem>>, vector<1x8x128xf32>
    %64 = vector.shape_cast %63 : vector<1x8x128xf32> to vector<8x128xf32>
    %65 = vector.shape_cast %61 : vector<8x128xf32> to vector<1x8x128xf32>
    tpu.vector_store %arg7[%62, %c0_34, %c0_35], %65 {strides = array<i32>} : memref<8x8x128xf32, #tpu.memory_space<vmem>>, vector<1x8x128xf32>,
    %66 = vector.shape_cast %57 : vector<8x1xi1> to vector<8x1xi1>
    %67 = vector.broadcast %66 : vector<8x1xi1> to vector<8x128xi1>
    %68 = arith.select %67, %54, %15 : vector<8x128xi1>, vector<8x128xf32>
    %69 = vector.shape_cast %57 : vector<8x1xi1> to vector<8x1xi1>
    %70 = vector.broadcast %69 : vector<8x1xi1> to vector<8x128xi1>
    %71 = arith.select %70, %52, %16 : vector<8x128xi1>, vector<8x128xf32>
    %c1_i32 = arith.constant 1 : i32
    %72 = arith.addi %17, %c1_i32 : i32
    %73 = arith.index_cast %72 : i32 to index
    %c0_36 = arith.constant 0 : index
    %c0_37 = arith.constant 0 : index
    %74 = vector.load %arg10[%73, %c0_36, %c0_37] : memref<8x8x512xf32, #tpu.memory_space<vmem>>, vector<1x8x512xf32>
    %75 = vector.shape_cast %74 : vector<1x8x512xf32> to vector<8x512xf32>
    %cst_38 = arith.constant dense<0.000000e+00> : vector<8x512xf32>
    %76 = tpu.matmul %68, %13, %cst_38 {dimension_numbers = #tpu.dot_dimension_numbers<[1], [0], [0], [1], [0, 0, 1, 1], [], []>} : vector<8x128xf32>, vector<128x512xf32>, vector<8x512xf32> -> vector<8x512xf32>
    %77 = arith.addf %75, %76 : vector<8x512xf32>
    %78 = vector.extract_strided_slice %77 {offsets = [0, 0], sizes = [8, 128], strides = [1, 1]} : vector<8x512xf32> to vector<8x128xf32>
    %cst_39 = arith.constant 5.000000e-01 : f32
    %79 = vector.broadcast %cst_39 : f32 to vector<8x128xf32>
    %80 = arith.mulf %79, %78 : vector<8x128xf32>
    %81 = math.tanh %80 : vector<8x128xf32>
    %cst_40 = arith.constant 1.000000e+00 : f32
    %82 = vector.broadcast %cst_40 : f32 to vector<8x128xf32>
    %83 = arith.addf %81, %82 : vector<8x128xf32>
    %cst_41 = arith.constant 5.000000e-01 : f32
    %84 = vector.broadcast %cst_41 : f32 to vector<8x128xf32>
    %85 = arith.mulf %84, %83 : vector<8x128xf32>
    %86 = vector.extract_strided_slice %77 {offsets = [0, 128], sizes = [8, 128], strides = [1, 1]} : vector<8x512xf32> to vector<8x128xf32>
    %cst_42 = arith.constant 5.000000e-01 : f32
    %87 = vector.broadcast %cst_42 : f32 to vector<8x128xf32>
    %88 = arith.mulf %87, %86 : vector<8x128xf32>
    %89 = math.tanh %88 : vector<8x128xf32>
    %cst_43 = arith.constant 1.000000e+00 : f32
    %90 = vector.broadcast %cst_43 : f32 to vector<8x128xf32>
    %91 = arith.addf %89, %90 : vector<8x128xf32>
    %cst_44 = arith.constant 5.000000e-01 : f32
    %92 = vector.broadcast %cst_44 : f32 to vector<8x128xf32>
    %93 = arith.mulf %92, %91 : vector<8x128xf32>
    %94 = vector.extract_strided_slice %77 {offsets = [0, 256], sizes = [8, 128], strides = [1, 1]} : vector<8x512xf32> to vector<8x128xf32>
    %95 = math.tanh %94 : vector<8x128xf32>
    %96 = vector.extract_strided_slice %77 {offsets = [0, 384], sizes = [8, 128], strides = [1, 1]} : vector<8x512xf32> to vector<8x128xf32>
    %cst_45 = arith.constant 5.000000e-01 : f32
    %97 = vector.broadcast %cst_45 : f32 to vector<8x128xf32>
    %98 = arith.mulf %97, %96 : vector<8x128xf32>
    %99 = math.tanh %98 : vector<8x128xf32>
    %cst_46 = arith.constant 1.000000e+00 : f32
    %100 = vector.broadcast %cst_46 : f32 to vector<8x128xf32>
    %101 = arith.addf %99, %100 : vector<8x128xf32>
    %cst_47 = arith.constant 5.000000e-01 : f32
    %102 = vector.broadcast %cst_47 : f32 to vector<8x128xf32>
    %103 = arith.mulf %102, %101 : vector<8x128xf32>
    %104 = arith.mulf %93, %71 : vector<8x128xf32>
    %105 = arith.mulf %85, %95 : vector<8x128xf32>
    %106 = arith.addf %104, %105 : vector<8x128xf32>
    %107 = math.tanh %106 : vector<8x128xf32>
    %108 = arith.mulf %103, %107 : vector<8x128xf32>
    %109 = arith.addi %14, %72 : i32
    %110 = vector.broadcast %109 : i32 to vector<8x1xi32>
    %111 = arith.cmpi sgt, %12, %110 : vector<8x1xi32>
    %cst_48 = arith.constant 0.000000e+00 : f32
    %112 = vector.shape_cast %111 : vector<8x1xi1> to vector<8x1xi1>
    %113 = vector.broadcast %112 : vector<8x1xi1> to vector<8x128xi1>
    %114 = vector.broadcast %cst_48 : f32 to vector<8x128xf32>
    %115 = arith.select %113, %108, %114 : vector<8x128xi1>, vector<8x128xf32>
    %116 = arith.index_cast %72 : i32 to index
    %c0_49 = arith.constant 0 : index
    %c0_50 = arith.constant 0 : index
    %117 = vector.load %arg7[%116, %c0_49, %c0_50] : memref<8x8x128xf32, #tpu.memory_space<vmem>>, vector<1x8x128xf32>
    %118 = vector.shape_cast %117 : vector<1x8x128xf32> to vector<8x128xf32>
    %119 = vector.shape_cast %115 : vector<8x128xf32> to vector<1x8x128xf32>
    tpu.vector_store %arg7[%116, %c0_49, %c0_50], %119 {strides = array<i32>} : memref<8x8x128xf32, #tpu.memory_space<vmem>>, vector<1x8x128xf32>,
    %120 = vector.shape_cast %111 : vector<8x1xi1> to vector<8x1xi1>
    %121 = vector.broadcast %120 : vector<8x1xi1> to vector<8x128xi1>
    %122 = arith.select %121, %108, %68 : vector<8x128xi1>, vector<8x128xf32>
    %123 = vector.shape_cast %111 : vector<8x1xi1> to vector<8x1xi1>
    %124 = vector.broadcast %123 : vector<8x1xi1> to vector<8x128xi1>
    %125 = arith.select %124, %106, %71 : vector<8x128xi1>, vector<8x128xf32>
    %c2_i32 = arith.constant 2 : i32
    %126 = arith.addi %17, %c2_i32 : i32
    %127 = arith.index_cast %126 : i32 to index
    %c0_51 = arith.constant 0 : index
    %c0_52 = arith.constant 0 : index
    %128 = vector.load %arg10[%127, %c0_51, %c0_52] : memref<8x8x512xf32, #tpu.memory_space<vmem>>, vector<1x8x512xf32>
    %129 = vector.shape_cast %128 : vector<1x8x512xf32> to vector<8x512xf32>
    %cst_53 = arith.constant dense<0.000000e+00> : vector<8x512xf32>
    %130 = tpu.matmul %122, %13, %cst_53 {dimension_numbers = #tpu.dot_dimension_numbers<[1], [0], [0], [1], [0, 0, 1, 1], [], []>} : vector<8x128xf32>, vector<128x512xf32>, vector<8x512xf32> -> vector<8x512xf32>
    %131 = arith.addf %129, %130 : vector<8x512xf32>
    %132 = vector.extract_strided_slice %131 {offsets = [0, 0], sizes = [8, 128], strides = [1, 1]} : vector<8x512xf32> to vector<8x128xf32>
    %cst_54 = arith.constant 5.000000e-01 : f32
    %133 = vector.broadcast %cst_54 : f32 to vector<8x128xf32>
    %134 = arith.mulf %133, %132 : vector<8x128xf32>
    %135 = math.tanh %134 : vector<8x128xf32>
    %cst_55 = arith.constant 1.000000e+00 : f32
    %136 = vector.broadcast %cst_55 : f32 to vector<8x128xf32>
    %137 = arith.addf %135, %136 : vector<8x128xf32>
    %cst_56 = arith.constant 5.000000e-01 : f32
    %138 = vector.broadcast %cst_56 : f32 to vector<8x128xf32>
    %139 = arith.mulf %138, %137 : vector<8x128xf32>
    %140 = vector.extract_strided_slice %131 {offsets = [0, 128], sizes = [8, 128], strides = [1, 1]} : vector<8x512xf32> to vector<8x128xf32>
    %cst_57 = arith.constant 5.000000e-01 : f32
    %141 = vector.broadcast %cst_57 : f32 to vector<8x128xf32>
    %142 = arith.mulf %141, %140 : vector<8x128xf32>
    %143 = math.tanh %142 : vector<8x128xf32>
    %cst_58 = arith.constant 1.000000e+00 : f32
    %144 = vector.broadcast %cst_58 : f32 to vector<8x128xf32>
    %145 = arith.addf %143, %144 : vector<8x128xf32>
    %cst_59 = arith.constant 5.000000e-01 : f32
    %146 = vector.broadcast %cst_59 : f32 to vector<8x128xf32>
    %147 = arith.mulf %146, %145 : vector<8x128xf32>
    %148 = vector.extract_strided_slice %131 {offsets = [0, 256], sizes = [8, 128], strides = [1, 1]} : vector<8x512xf32> to vector<8x128xf32>
    %149 = math.tanh %148 : vector<8x128xf32>
    %150 = vector.extract_strided_slice %131 {offsets = [0, 384], sizes = [8, 128], strides = [1, 1]} : vector<8x512xf32> to vector<8x128xf32>
    %cst_60 = arith.constant 5.000000e-01 : f32
    %151 = vector.broadcast %cst_60 : f32 to vector<8x128xf32>
    %152 = arith.mulf %151, %150 : vector<8x128xf32>
    %153 = math.tanh %152 : vector<8x128xf32>
    %cst_61 = arith.constant 1.000000e+00 : f32
    %154 = vector.broadcast %cst_61 : f32 to vector<8x128xf32>
    %155 = arith.addf %153, %154 : vector<8x128xf32>
    %cst_62 = arith.constant 5.000000e-01 : f32
    %156 = vector.broadcast %cst_62 : f32 to vector<8x128xf32>
    %157 = arith.mulf %156, %155 : vector<8x128xf32>
    %158 = arith.mulf %147, %125 : vector<8x128xf32>
    %159 = arith.mulf %139, %149 : vector<8x128xf32>
    %160 = arith.addf %158, %159 : vector<8x128xf32>
    %161 = math.tanh %160 : vector<8x128xf32>
    %162 = arith.mulf %157, %161 : vector<8x128xf32>
    %163 = arith.addi %14, %126 : i32
    %164 = vector.broadcast %163 : i32 to vector<8x1xi32>
    %165 = arith.cmpi sgt, %12, %164 : vector<8x1xi32>
    %cst_63 = arith.constant 0.000000e+00 : f32
    %166 = vector.shape_cast %165 : vector<8x1xi1> to vector<8x1xi1>
    %167 = vector.broadcast %166 : vector<8x1xi1> to vector<8x128xi1>
    %168 = vector.broadcast %cst_63 : f32 to vector<8x128xf32>
    %169 = arith.select %167, %162, %168 : vector<8x128xi1>, vector<8x128xf32>
    %170 = arith.index_cast %126 : i32 to index
    %c0_64 = arith.constant 0 : index
    %c0_65 = arith.constant 0 : index
    %171 = vector.load %arg7[%170, %c0_64, %c0_65] : memref<8x8x128xf32, #tpu.memory_space<vmem>>, vector<1x8x128xf32>
    %172 = vector.shape_cast %171 : vector<1x8x128xf32> to vector<8x128xf32>
    %173 = vector.shape_cast %169 : vector<8x128xf32> to vector<1x8x128xf32>
    tpu.vector_store %arg7[%170, %c0_64, %c0_65], %173 {strides = array<i32>} : memref<8x8x128xf32, #tpu.memory_space<vmem>>, vector<1x8x128xf32>,
    %174 = vector.shape_cast %165 : vector<8x1xi1> to vector<8x1xi1>
    %175 = vector.broadcast %174 : vector<8x1xi1> to vector<8x128xi1>
    %176 = arith.select %175, %162, %122 : vector<8x128xi1>, vector<8x128xf32>
    %177 = vector.shape_cast %165 : vector<8x1xi1> to vector<8x1xi1>
    %178 = vector.broadcast %177 : vector<8x1xi1> to vector<8x128xi1>
    %179 = arith.select %178, %160, %125 : vector<8x128xi1>, vector<8x128xf32>
    %c3_i32 = arith.constant 3 : i32
    %180 = arith.addi %17, %c3_i32 : i32
    %181 = arith.index_cast %180 : i32 to index
    %c0_66 = arith.constant 0 : index
    %c0_67 = arith.constant 0 : index
    %182 = vector.load %arg10[%181, %c0_66, %c0_67] : memref<8x8x512xf32, #tpu.memory_space<vmem>>, vector<1x8x512xf32>
    %183 = vector.shape_cast %182 : vector<1x8x512xf32> to vector<8x512xf32>
    %cst_68 = arith.constant dense<0.000000e+00> : vector<8x512xf32>
    %184 = tpu.matmul %176, %13, %cst_68 {dimension_numbers = #tpu.dot_dimension_numbers<[1], [0], [0], [1], [0, 0, 1, 1], [], []>} : vector<8x128xf32>, vector<128x512xf32>, vector<8x512xf32> -> vector<8x512xf32>
    %185 = arith.addf %183, %184 : vector<8x512xf32>
    %186 = vector.extract_strided_slice %185 {offsets = [0, 0], sizes = [8, 128], strides = [1, 1]} : vector<8x512xf32> to vector<8x128xf32>
    %cst_69 = arith.constant 5.000000e-01 : f32
    %187 = vector.broadcast %cst_69 : f32 to vector<8x128xf32>
    %188 = arith.mulf %187, %186 : vector<8x128xf32>
    %189 = math.tanh %188 : vector<8x128xf32>
    %cst_70 = arith.constant 1.000000e+00 : f32
    %190 = vector.broadcast %cst_70 : f32 to vector<8x128xf32>
    %191 = arith.addf %189, %190 : vector<8x128xf32>
    %cst_71 = arith.constant 5.000000e-01 : f32
    %192 = vector.broadcast %cst_71 : f32 to vector<8x128xf32>
    %193 = arith.mulf %192, %191 : vector<8x128xf32>
    %194 = vector.extract_strided_slice %185 {offsets = [0, 128], sizes = [8, 128], strides = [1, 1]} : vector<8x512xf32> to vector<8x128xf32>
    %cst_72 = arith.constant 5.000000e-01 : f32
    %195 = vector.broadcast %cst_72 : f32 to vector<8x128xf32>
    %196 = arith.mulf %195, %194 : vector<8x128xf32>
    %197 = math.tanh %196 : vector<8x128xf32>
    %cst_73 = arith.constant 1.000000e+00 : f32
    %198 = vector.broadcast %cst_73 : f32 to vector<8x128xf32>
    %199 = arith.addf %197, %198 : vector<8x128xf32>
    %cst_74 = arith.constant 5.000000e-01 : f32
    %200 = vector.broadcast %cst_74 : f32 to vector<8x128xf32>
    %201 = arith.mulf %200, %199 : vector<8x128xf32>
    %202 = vector.extract_strided_slice %185 {offsets = [0, 256], sizes = [8, 128], strides = [1, 1]} : vector<8x512xf32> to vector<8x128xf32>
    %203 = math.tanh %202 : vector<8x128xf32>
    %204 = vector.extract_strided_slice %185 {offsets = [0, 384], sizes = [8, 128], strides = [1, 1]} : vector<8x512xf32> to vector<8x128xf32>
    %cst_75 = arith.constant 5.000000e-01 : f32
    %205 = vector.broadcast %cst_75 : f32 to vector<8x128xf32>
    %206 = arith.mulf %205, %204 : vector<8x128xf32>
    %207 = math.tanh %206 : vector<8x128xf32>
    %cst_76 = arith.constant 1.000000e+00 : f32
    %208 = vector.broadcast %cst_76 : f32 to vector<8x128xf32>
    %209 = arith.addf %207, %208 : vector<8x128xf32>
    %cst_77 = arith.constant 5.000000e-01 : f32
    %210 = vector.broadcast %cst_77 : f32 to vector<8x128xf32>
    %211 = arith.mulf %210, %209 : vector<8x128xf32>
    %212 = arith.mulf %201, %179 : vector<8x128xf32>
    %213 = arith.mulf %193, %203 : vector<8x128xf32>
    %214 = arith.addf %212, %213 : vector<8x128xf32>
    %215 = math.tanh %214 : vector<8x128xf32>
    %216 = arith.mulf %211, %215 : vector<8x128xf32>
    %217 = arith.addi %14, %180 : i32
    %218 = vector.broadcast %217 : i32 to vector<8x1xi32>
    %219 = arith.cmpi sgt, %12, %218 : vector<8x1xi32>
    %cst_78 = arith.constant 0.000000e+00 : f32
    %220 = vector.shape_cast %219 : vector<8x1xi1> to vector<8x1xi1>
    %221 = vector.broadcast %220 : vector<8x1xi1> to vector<8x128xi1>
    %222 = vector.broadcast %cst_78 : f32 to vector<8x128xf32>
    %223 = arith.select %221, %216, %222 : vector<8x128xi1>, vector<8x128xf32>
    %224 = arith.index_cast %180 : i32 to index
    %c0_79 = arith.constant 0 : index
    %c0_80 = arith.constant 0 : index
    %225 = vector.load %arg7[%224, %c0_79, %c0_80] : memref<8x8x128xf32, #tpu.memory_space<vmem>>, vector<1x8x128xf32>
    %226 = vector.shape_cast %225 : vector<1x8x128xf32> to vector<8x128xf32>
    %227 = vector.shape_cast %223 : vector<8x128xf32> to vector<1x8x128xf32>
    tpu.vector_store %arg7[%224, %c0_79, %c0_80], %227 {strides = array<i32>} : memref<8x8x128xf32, #tpu.memory_space<vmem>>, vector<1x8x128xf32>,
    %228 = vector.shape_cast %219 : vector<8x1xi1> to vector<8x1xi1>
    %229 = vector.broadcast %228 : vector<8x1xi1> to vector<8x128xi1>
    %230 = arith.select %229, %216, %176 : vector<8x128xi1>, vector<8x128xf32>
    %231 = vector.shape_cast %219 : vector<8x1xi1> to vector<8x1xi1>
    %232 = vector.broadcast %231 : vector<8x1xi1> to vector<8x128xi1>
    %233 = arith.select %232, %214, %179 : vector<8x128xi1>, vector<8x128xf32>
    %c4_i32 = arith.constant 4 : i32
    %234 = arith.addi %17, %c4_i32 : i32
    %235 = arith.index_cast %234 : i32 to index
    %c0_81 = arith.constant 0 : index
    %c0_82 = arith.constant 0 : index
    %236 = vector.load %arg10[%235, %c0_81, %c0_82] : memref<8x8x512xf32, #tpu.memory_space<vmem>>, vector<1x8x512xf32>
    %237 = vector.shape_cast %236 : vector<1x8x512xf32> to vector<8x512xf32>
    %cst_83 = arith.constant dense<0.000000e+00> : vector<8x512xf32>
    %238 = tpu.matmul %230, %13, %cst_83 {dimension_numbers = #tpu.dot_dimension_numbers<[1], [0], [0], [1], [0, 0, 1, 1], [], []>} : vector<8x128xf32>, vector<128x512xf32>, vector<8x512xf32> -> vector<8x512xf32>
    %239 = arith.addf %237, %238 : vector<8x512xf32>
    %240 = vector.extract_strided_slice %239 {offsets = [0, 0], sizes = [8, 128], strides = [1, 1]} : vector<8x512xf32> to vector<8x128xf32>
    %cst_84 = arith.constant 5.000000e-01 : f32
    %241 = vector.broadcast %cst_84 : f32 to vector<8x128xf32>
    %242 = arith.mulf %241, %240 : vector<8x128xf32>
    %243 = math.tanh %242 : vector<8x128xf32>
    %cst_85 = arith.constant 1.000000e+00 : f32
    %244 = vector.broadcast %cst_85 : f32 to vector<8x128xf32>
    %245 = arith.addf %243, %244 : vector<8x128xf32>
    %cst_86 = arith.constant 5.000000e-01 : f32
    %246 = vector.broadcast %cst_86 : f32 to vector<8x128xf32>
    %247 = arith.mulf %246, %245 : vector<8x128xf32>
    %248 = vector.extract_strided_slice %239 {offsets = [0, 128], sizes = [8, 128], strides = [1, 1]} : vector<8x512xf32> to vector<8x128xf32>
    %cst_87 = arith.constant 5.000000e-01 : f32
    %249 = vector.broadcast %cst_87 : f32 to vector<8x128xf32>
    %250 = arith.mulf %249, %248 : vector<8x128xf32>
    %251 = math.tanh %250 : vector<8x128xf32>
    %cst_88 = arith.constant 1.000000e+00 : f32
    %252 = vector.broadcast %cst_88 : f32 to vector<8x128xf32>
    %253 = arith.addf %251, %252 : vector<8x128xf32>
    %cst_89 = arith.constant 5.000000e-01 : f32
    %254 = vector.broadcast %cst_89 : f32 to vector<8x128xf32>
    %255 = arith.mulf %254, %253 : vector<8x128xf32>
    %256 = vector.extract_strided_slice %239 {offsets = [0, 256], sizes = [8, 128], strides = [1, 1]} : vector<8x512xf32> to vector<8x128xf32>
    %257 = math.tanh %256 : vector<8x128xf32>
    %258 = vector.extract_strided_slice %239 {offsets = [0, 384], sizes = [8, 128], strides = [1, 1]} : vector<8x512xf32> to vector<8x128xf32>
    %cst_90 = arith.constant 5.000000e-01 : f32
    %259 = vector.broadcast %cst_90 : f32 to vector<8x128xf32>
    %260 = arith.mulf %259, %258 : vector<8x128xf32>
    %261 = math.tanh %260 : vector<8x128xf32>
    %cst_91 = arith.constant 1.000000e+00 : f32
    %262 = vector.broadcast %cst_91 : f32 to vector<8x128xf32>
    %263 = arith.addf %261, %262 : vector<8x128xf32>
    %cst_92 = arith.constant 5.000000e-01 : f32
    %264 = vector.broadcast %cst_92 : f32 to vector<8x128xf32>
    %265 = arith.mulf %264, %263 : vector<8x128xf32>
    %266 = arith.mulf %255, %233 : vector<8x128xf32>
    %267 = arith.mulf %247, %257 : vector<8x128xf32>
    %268 = arith.addf %266, %267 : vector<8x128xf32>
    %269 = math.tanh %268 : vector<8x128xf32>
    %270 = arith.mulf %265, %269 : vector<8x128xf32>
    %271 = arith.addi %14, %234 : i32
    %272 = vector.broadcast %271 : i32 to vector<8x1xi32>
    %273 = arith.cmpi sgt, %12, %272 : vector<8x1xi32>
    %cst_93 = arith.constant 0.000000e+00 : f32
    %274 = vector.shape_cast %273 : vector<8x1xi1> to vector<8x1xi1>
    %275 = vector.broadcast %274 : vector<8x1xi1> to vector<8x128xi1>
    %276 = vector.broadcast %cst_93 : f32 to vector<8x128xf32>
    %277 = arith.select %275, %270, %276 : vector<8x128xi1>, vector<8x128xf32>
    %278 = arith.index_cast %234 : i32 to index
    %c0_94 = arith.constant 0 : index
    %c0_95 = arith.constant 0 : index
    %279 = vector.load %arg7[%278, %c0_94, %c0_95] : memref<8x8x128xf32, #tpu.memory_space<vmem>>, vector<1x8x128xf32>
    %280 = vector.shape_cast %279 : vector<1x8x128xf32> to vector<8x128xf32>
    %281 = vector.shape_cast %277 : vector<8x128xf32> to vector<1x8x128xf32>
    tpu.vector_store %arg7[%278, %c0_94, %c0_95], %281 {strides = array<i32>} : memref<8x8x128xf32, #tpu.memory_space<vmem>>, vector<1x8x128xf32>,
    %282 = vector.shape_cast %273 : vector<8x1xi1> to vector<8x1xi1>
    %283 = vector.broadcast %282 : vector<8x1xi1> to vector<8x128xi1>
    %284 = arith.select %283, %270, %230 : vector<8x128xi1>, vector<8x128xf32>
    %285 = vector.shape_cast %273 : vector<8x1xi1> to vector<8x1xi1>
    %286 = vector.broadcast %285 : vector<8x1xi1> to vector<8x128xi1>
    %287 = arith.select %286, %268, %233 : vector<8x128xi1>, vector<8x128xf32>
    %c5_i32 = arith.constant 5 : i32
    %288 = arith.addi %17, %c5_i32 : i32
    %289 = arith.index_cast %288 : i32 to index
    %c0_96 = arith.constant 0 : index
    %c0_97 = arith.constant 0 : index
    %290 = vector.load %arg10[%289, %c0_96, %c0_97] : memref<8x8x512xf32, #tpu.memory_space<vmem>>, vector<1x8x512xf32>
    %291 = vector.shape_cast %290 : vector<1x8x512xf32> to vector<8x512xf32>
    %cst_98 = arith.constant dense<0.000000e+00> : vector<8x512xf32>
    %292 = tpu.matmul %284, %13, %cst_98 {dimension_numbers = #tpu.dot_dimension_numbers<[1], [0], [0], [1], [0, 0, 1, 1], [], []>} : vector<8x128xf32>, vector<128x512xf32>, vector<8x512xf32> -> vector<8x512xf32>
    %293 = arith.addf %291, %292 : vector<8x512xf32>
    %294 = vector.extract_strided_slice %293 {offsets = [0, 0], sizes = [8, 128], strides = [1, 1]} : vector<8x512xf32> to vector<8x128xf32>
    %cst_99 = arith.constant 5.000000e-01 : f32
    %295 = vector.broadcast %cst_99 : f32 to vector<8x128xf32>
    %296 = arith.mulf %295, %294 : vector<8x128xf32>
    %297 = math.tanh %296 : vector<8x128xf32>
    %cst_100 = arith.constant 1.000000e+00 : f32
    %298 = vector.broadcast %cst_100 : f32 to vector<8x128xf32>
    %299 = arith.addf %297, %298 : vector<8x128xf32>
    %cst_101 = arith.constant 5.000000e-01 : f32
    %300 = vector.broadcast %cst_101 : f32 to vector<8x128xf32>
    %301 = arith.mulf %300, %299 : vector<8x128xf32>
    %302 = vector.extract_strided_slice %293 {offsets = [0, 128], sizes = [8, 128], strides = [1, 1]} : vector<8x512xf32> to vector<8x128xf32>
    %cst_102 = arith.constant 5.000000e-01 : f32
    %303 = vector.broadcast %cst_102 : f32 to vector<8x128xf32>
    %304 = arith.mulf %303, %302 : vector<8x128xf32>
    %305 = math.tanh %304 : vector<8x128xf32>
    %cst_103 = arith.constant 1.000000e+00 : f32
    %306 = vector.broadcast %cst_103 : f32 to vector<8x128xf32>
    %307 = arith.addf %305, %306 : vector<8x128xf32>
    %cst_104 = arith.constant 5.000000e-01 : f32
    %308 = vector.broadcast %cst_104 : f32 to vector<8x128xf32>
    %309 = arith.mulf %308, %307 : vector<8x128xf32>
    %310 = vector.extract_strided_slice %293 {offsets = [0, 256], sizes = [8, 128], strides = [1, 1]} : vector<8x512xf32> to vector<8x128xf32>
    %311 = math.tanh %310 : vector<8x128xf32>
    %312 = vector.extract_strided_slice %293 {offsets = [0, 384], sizes = [8, 128], strides = [1, 1]} : vector<8x512xf32> to vector<8x128xf32>
    %cst_105 = arith.constant 5.000000e-01 : f32
    %313 = vector.broadcast %cst_105 : f32 to vector<8x128xf32>
    %314 = arith.mulf %313, %312 : vector<8x128xf32>
    %315 = math.tanh %314 : vector<8x128xf32>
    %cst_106 = arith.constant 1.000000e+00 : f32
    %316 = vector.broadcast %cst_106 : f32 to vector<8x128xf32>
    %317 = arith.addf %315, %316 : vector<8x128xf32>
    %cst_107 = arith.constant 5.000000e-01 : f32
    %318 = vector.broadcast %cst_107 : f32 to vector<8x128xf32>
    %319 = arith.mulf %318, %317 : vector<8x128xf32>
    %320 = arith.mulf %309, %287 : vector<8x128xf32>
    %321 = arith.mulf %301, %311 : vector<8x128xf32>
    %322 = arith.addf %320, %321 : vector<8x128xf32>
    %323 = math.tanh %322 : vector<8x128xf32>
    %324 = arith.mulf %319, %323 : vector<8x128xf32>
    %325 = arith.addi %14, %288 : i32
    %326 = vector.broadcast %325 : i32 to vector<8x1xi32>
    %327 = arith.cmpi sgt, %12, %326 : vector<8x1xi32>
    %cst_108 = arith.constant 0.000000e+00 : f32
    %328 = vector.shape_cast %327 : vector<8x1xi1> to vector<8x1xi1>
    %329 = vector.broadcast %328 : vector<8x1xi1> to vector<8x128xi1>
    %330 = vector.broadcast %cst_108 : f32 to vector<8x128xf32>
    %331 = arith.select %329, %324, %330 : vector<8x128xi1>, vector<8x128xf32>
    %332 = arith.index_cast %288 : i32 to index
    %c0_109 = arith.constant 0 : index
    %c0_110 = arith.constant 0 : index
    %333 = vector.load %arg7[%332, %c0_109, %c0_110] : memref<8x8x128xf32, #tpu.memory_space<vmem>>, vector<1x8x128xf32>
    %334 = vector.shape_cast %333 : vector<1x8x128xf32> to vector<8x128xf32>
    %335 = vector.shape_cast %331 : vector<8x128xf32> to vector<1x8x128xf32>
    tpu.vector_store %arg7[%332, %c0_109, %c0_110], %335 {strides = array<i32>} : memref<8x8x128xf32, #tpu.memory_space<vmem>>, vector<1x8x128xf32>,
    %336 = vector.shape_cast %327 : vector<8x1xi1> to vector<8x1xi1>
    %337 = vector.broadcast %336 : vector<8x1xi1> to vector<8x128xi1>
    %338 = arith.select %337, %324, %284 : vector<8x128xi1>, vector<8x128xf32>
    %339 = vector.shape_cast %327 : vector<8x1xi1> to vector<8x1xi1>
    %340 = vector.broadcast %339 : vector<8x1xi1> to vector<8x128xi1>
    %341 = arith.select %340, %322, %287 : vector<8x128xi1>, vector<8x128xf32>
    %c6_i32 = arith.constant 6 : i32
    %342 = arith.addi %17, %c6_i32 : i32
    %343 = arith.index_cast %342 : i32 to index
    %c0_111 = arith.constant 0 : index
    %c0_112 = arith.constant 0 : index
    %344 = vector.load %arg10[%343, %c0_111, %c0_112] : memref<8x8x512xf32, #tpu.memory_space<vmem>>, vector<1x8x512xf32>
    %345 = vector.shape_cast %344 : vector<1x8x512xf32> to vector<8x512xf32>
    %cst_113 = arith.constant dense<0.000000e+00> : vector<8x512xf32>
    %346 = tpu.matmul %338, %13, %cst_113 {dimension_numbers = #tpu.dot_dimension_numbers<[1], [0], [0], [1], [0, 0, 1, 1], [], []>} : vector<8x128xf32>, vector<128x512xf32>, vector<8x512xf32> -> vector<8x512xf32>
    %347 = arith.addf %345, %346 : vector<8x512xf32>
    %348 = vector.extract_strided_slice %347 {offsets = [0, 0], sizes = [8, 128], strides = [1, 1]} : vector<8x512xf32> to vector<8x128xf32>
    %cst_114 = arith.constant 5.000000e-01 : f32
    %349 = vector.broadcast %cst_114 : f32 to vector<8x128xf32>
    %350 = arith.mulf %349, %348 : vector<8x128xf32>
    %351 = math.tanh %350 : vector<8x128xf32>
    %cst_115 = arith.constant 1.000000e+00 : f32
    %352 = vector.broadcast %cst_115 : f32 to vector<8x128xf32>
    %353 = arith.addf %351, %352 : vector<8x128xf32>
    %cst_116 = arith.constant 5.000000e-01 : f32
    %354 = vector.broadcast %cst_116 : f32 to vector<8x128xf32>
    %355 = arith.mulf %354, %353 : vector<8x128xf32>
    %356 = vector.extract_strided_slice %347 {offsets = [0, 128], sizes = [8, 128], strides = [1, 1]} : vector<8x512xf32> to vector<8x128xf32>
    %cst_117 = arith.constant 5.000000e-01 : f32
    %357 = vector.broadcast %cst_117 : f32 to vector<8x128xf32>
    %358 = arith.mulf %357, %356 : vector<8x128xf32>
    %359 = math.tanh %358 : vector<8x128xf32>
    %cst_118 = arith.constant 1.000000e+00 : f32
    %360 = vector.broadcast %cst_118 : f32 to vector<8x128xf32>
    %361 = arith.addf %359, %360 : vector<8x128xf32>
    %cst_119 = arith.constant 5.000000e-01 : f32
    %362 = vector.broadcast %cst_119 : f32 to vector<8x128xf32>
    %363 = arith.mulf %362, %361 : vector<8x128xf32>
    %364 = vector.extract_strided_slice %347 {offsets = [0, 256], sizes = [8, 128], strides = [1, 1]} : vector<8x512xf32> to vector<8x128xf32>
    %365 = math.tanh %364 : vector<8x128xf32>
    %366 = vector.extract_strided_slice %347 {offsets = [0, 384], sizes = [8, 128], strides = [1, 1]} : vector<8x512xf32> to vector<8x128xf32>
    %cst_120 = arith.constant 5.000000e-01 : f32
    %367 = vector.broadcast %cst_120 : f32 to vector<8x128xf32>
    %368 = arith.mulf %367, %366 : vector<8x128xf32>
    %369 = math.tanh %368 : vector<8x128xf32>
    %cst_121 = arith.constant 1.000000e+00 : f32
    %370 = vector.broadcast %cst_121 : f32 to vector<8x128xf32>
    %371 = arith.addf %369, %370 : vector<8x128xf32>
    %cst_122 = arith.constant 5.000000e-01 : f32
    %372 = vector.broadcast %cst_122 : f32 to vector<8x128xf32>
    %373 = arith.mulf %372, %371 : vector<8x128xf32>
    %374 = arith.mulf %363, %341 : vector<8x128xf32>
    %375 = arith.mulf %355, %365 : vector<8x128xf32>
    %376 = arith.addf %374, %375 : vector<8x128xf32>
    %377 = math.tanh %376 : vector<8x128xf32>
    %378 = arith.mulf %373, %377 : vector<8x128xf32>
    %379 = arith.addi %14, %342 : i32
    %380 = vector.broadcast %379 : i32 to vector<8x1xi32>
    %381 = arith.cmpi sgt, %12, %380 : vector<8x1xi32>
    %cst_123 = arith.constant 0.000000e+00 : f32
    %382 = vector.shape_cast %381 : vector<8x1xi1> to vector<8x1xi1>
    %383 = vector.broadcast %382 : vector<8x1xi1> to vector<8x128xi1>
    %384 = vector.broadcast %cst_123 : f32 to vector<8x128xf32>
    %385 = arith.select %383, %378, %384 : vector<8x128xi1>, vector<8x128xf32>
    %386 = arith.index_cast %342 : i32 to index
    %c0_124 = arith.constant 0 : index
    %c0_125 = arith.constant 0 : index
    %387 = vector.load %arg7[%386, %c0_124, %c0_125] : memref<8x8x128xf32, #tpu.memory_space<vmem>>, vector<1x8x128xf32>
    %388 = vector.shape_cast %387 : vector<1x8x128xf32> to vector<8x128xf32>
    %389 = vector.shape_cast %385 : vector<8x128xf32> to vector<1x8x128xf32>
    tpu.vector_store %arg7[%386, %c0_124, %c0_125], %389 {strides = array<i32>} : memref<8x8x128xf32, #tpu.memory_space<vmem>>, vector<1x8x128xf32>,
    %390 = vector.shape_cast %381 : vector<8x1xi1> to vector<8x1xi1>
    %391 = vector.broadcast %390 : vector<8x1xi1> to vector<8x128xi1>
    %392 = arith.select %391, %378, %338 : vector<8x128xi1>, vector<8x128xf32>
    %393 = vector.shape_cast %381 : vector<8x1xi1> to vector<8x1xi1>
    %394 = vector.broadcast %393 : vector<8x1xi1> to vector<8x128xi1>
    %395 = arith.select %394, %376, %341 : vector<8x128xi1>, vector<8x128xf32>
    %c7_i32 = arith.constant 7 : i32
    %396 = arith.addi %17, %c7_i32 : i32
    %397 = arith.index_cast %396 : i32 to index
    %c0_126 = arith.constant 0 : index
    %c0_127 = arith.constant 0 : index
    %398 = vector.load %arg10[%397, %c0_126, %c0_127] : memref<8x8x512xf32, #tpu.memory_space<vmem>>, vector<1x8x512xf32>
    %399 = vector.shape_cast %398 : vector<1x8x512xf32> to vector<8x512xf32>
    %cst_128 = arith.constant dense<0.000000e+00> : vector<8x512xf32>
    %400 = tpu.matmul %392, %13, %cst_128 {dimension_numbers = #tpu.dot_dimension_numbers<[1], [0], [0], [1], [0, 0, 1, 1], [], []>} : vector<8x128xf32>, vector<128x512xf32>, vector<8x512xf32> -> vector<8x512xf32>
    %401 = arith.addf %399, %400 : vector<8x512xf32>
    %402 = vector.extract_strided_slice %401 {offsets = [0, 0], sizes = [8, 128], strides = [1, 1]} : vector<8x512xf32> to vector<8x128xf32>
    %cst_129 = arith.constant 5.000000e-01 : f32
    %403 = vector.broadcast %cst_129 : f32 to vector<8x128xf32>
    %404 = arith.mulf %403, %402 : vector<8x128xf32>
    %405 = math.tanh %404 : vector<8x128xf32>
    %cst_130 = arith.constant 1.000000e+00 : f32
    %406 = vector.broadcast %cst_130 : f32 to vector<8x128xf32>
    %407 = arith.addf %405, %406 : vector<8x128xf32>
    %cst_131 = arith.constant 5.000000e-01 : f32
    %408 = vector.broadcast %cst_131 : f32 to vector<8x128xf32>
    %409 = arith.mulf %408, %407 : vector<8x128xf32>
    %410 = vector.extract_strided_slice %401 {offsets = [0, 128], sizes = [8, 128], strides = [1, 1]} : vector<8x512xf32> to vector<8x128xf32>
    %cst_132 = arith.constant 5.000000e-01 : f32
    %411 = vector.broadcast %cst_132 : f32 to vector<8x128xf32>
    %412 = arith.mulf %411, %410 : vector<8x128xf32>
    %413 = math.tanh %412 : vector<8x128xf32>
    %cst_133 = arith.constant 1.000000e+00 : f32
    %414 = vector.broadcast %cst_133 : f32 to vector<8x128xf32>
    %415 = arith.addf %413, %414 : vector<8x128xf32>
    %cst_134 = arith.constant 5.000000e-01 : f32
    %416 = vector.broadcast %cst_134 : f32 to vector<8x128xf32>
    %417 = arith.mulf %416, %415 : vector<8x128xf32>
    %418 = vector.extract_strided_slice %401 {offsets = [0, 256], sizes = [8, 128], strides = [1, 1]} : vector<8x512xf32> to vector<8x128xf32>
    %419 = math.tanh %418 : vector<8x128xf32>
    %420 = vector.extract_strided_slice %401 {offsets = [0, 384], sizes = [8, 128], strides = [1, 1]} : vector<8x512xf32> to vector<8x128xf32>
    %cst_135 = arith.constant 5.000000e-01 : f32
    %421 = vector.broadcast %cst_135 : f32 to vector<8x128xf32>
    %422 = arith.mulf %421, %420 : vector<8x128xf32>
    %423 = math.tanh %422 : vector<8x128xf32>
    %cst_136 = arith.constant 1.000000e+00 : f32
    %424 = vector.broadcast %cst_136 : f32 to vector<8x128xf32>
    %425 = arith.addf %423, %424 : vector<8x128xf32>
    %cst_137 = arith.constant 5.000000e-01 : f32
    %426 = vector.broadcast %cst_137 : f32 to vector<8x128xf32>
    %427 = arith.mulf %426, %425 : vector<8x128xf32>
    %428 = arith.mulf %417, %395 : vector<8x128xf32>
    %429 = arith.mulf %409, %419 : vector<8x128xf32>
    %430 = arith.addf %428, %429 : vector<8x128xf32>
    %431 = math.tanh %430 : vector<8x128xf32>
    %432 = arith.mulf %427, %431 : vector<8x128xf32>
    %433 = arith.addi %14, %396 : i32
    %434 = vector.broadcast %433 : i32 to vector<8x1xi32>
    %435 = arith.cmpi sgt, %12, %434 : vector<8x1xi32>
    %cst_138 = arith.constant 0.000000e+00 : f32
    %436 = vector.shape_cast %435 : vector<8x1xi1> to vector<8x1xi1>
    %437 = vector.broadcast %436 : vector<8x1xi1> to vector<8x128xi1>
    %438 = vector.broadcast %cst_138 : f32 to vector<8x128xf32>
    %439 = arith.select %437, %432, %438 : vector<8x128xi1>, vector<8x128xf32>
    %440 = arith.index_cast %396 : i32 to index
    %c0_139 = arith.constant 0 : index
    %c0_140 = arith.constant 0 : index
    %441 = vector.load %arg7[%440, %c0_139, %c0_140] : memref<8x8x128xf32, #tpu.memory_space<vmem>>, vector<1x8x128xf32>
    %442 = vector.shape_cast %441 : vector<1x8x128xf32> to vector<8x128xf32>
    %443 = vector.shape_cast %439 : vector<8x128xf32> to vector<1x8x128xf32>
    tpu.vector_store %arg7[%440, %c0_139, %c0_140], %443 {strides = array<i32>} : memref<8x8x128xf32, #tpu.memory_space<vmem>>, vector<1x8x128xf32>,
    %444 = vector.shape_cast %435 : vector<8x1xi1> to vector<8x1xi1>
    %445 = vector.broadcast %444 : vector<8x1xi1> to vector<8x128xi1>
    %446 = arith.select %445, %432, %392 : vector<8x128xi1>, vector<8x128xf32>
    %447 = vector.shape_cast %435 : vector<8x1xi1> to vector<8x1xi1>
    %448 = vector.broadcast %447 : vector<8x1xi1> to vector<8x128xi1>
    %449 = arith.select %448, %430, %395 : vector<8x128xi1>, vector<8x128xf32>
    %c1_i32_141 = arith.constant 1 : i32
    %c0_142 = arith.constant 0 : index
    %c0_143 = arith.constant 0 : index
    %450 = vector.load %arg11[%c0_142, %c0_143] : memref<8x128xf32, #tpu.memory_space<vmem>>, vector<8x128xf32>
    tpu.vector_store %arg11[%c0_142, %c0_143], %446 {strides = array<i32>} : memref<8x128xf32, #tpu.memory_space<vmem>>, vector<8x128xf32>,
    %c0_144 = arith.constant 0 : index
    %c0_145 = arith.constant 0 : index
    %451 = vector.load %arg12[%c0_144, %c0_145] : memref<8x128xf32, #tpu.memory_space<vmem>>, vector<8x128xf32>
    tpu.vector_store %arg12[%c0_144, %c0_145], %449 {strides = array<i32>} : memref<8x128xf32, #tpu.memory_space<vmem>>, vector<8x128xf32>,
    %c0_i32_146 = arith.constant 0 : i32
    %452 = arith.cmpi eq, %arg1, %c0_i32_146 : i32
    %453 = arith.extui %452 : i1 to i32
    %c0_i32_147 = arith.constant 0 : i32
    %454 = arith.cmpi ne, %453, %c0_i32_147 : i32
    scf.if %454 {
      %c0_148 = arith.constant 0 : index
      %c0_149 = arith.constant 0 : index
      %455 = vector.load %arg8[%c0_148, %c0_149] : memref<8x128xf32, #tpu.memory_space<vmem>>, vector<8x128xf32>
      tpu.vector_store %arg8[%c0_148, %c0_149], %446 {strides = array<i32>} : memref<8x128xf32, #tpu.memory_space<vmem>>, vector<8x128xf32>,
      %c0_150 = arith.constant 0 : index
      %c0_151 = arith.constant 0 : index
      %456 = vector.load %arg9[%c0_150, %c0_151] : memref<8x128xf32, #tpu.memory_space<vmem>>, vector<8x128xf32>
      tpu.vector_store %arg9[%c0_150, %c0_151], %449 {strides = array<i32>} : memref<8x128xf32, #tpu.memory_space<vmem>>, vector<8x128xf32>,
    } else {
    }
    return
  }
  func.func @transform_0(%arg0: i32, %arg1: i32) -> (i32, i32) {
    %c0_i32 = arith.constant 0 : i32
    %c0_i32_0 = arith.constant 0 : i32
    return %arg0, %c0_i32 : i32, i32
  }
  func.func @transform_1(%arg0: i32, %arg1: i32) -> (i32, i32, i32) {
    %c0_i32 = arith.constant 0 : i32
    %c0_i32_0 = arith.constant 0 : i32
    return %arg1, %arg0, %c0_i32 : i32, i32, i32
  }
  func.func @transform_2(%arg0: i32, %arg1: i32) -> (i32, i32) {
    %c0_i32 = arith.constant 0 : i32
    %c0_i32_0 = arith.constant 0 : i32
    %c0_i32_1 = arith.constant 0 : i32
    return %c0_i32, %c0_i32_0 : i32, i32
  }
  func.func @transform_3(%arg0: i32, %arg1: i32) -> (i32, i32) {
    %c0_i32 = arith.constant 0 : i32
    %c0_i32_0 = arith.constant 0 : i32
    %c0_i32_1 = arith.constant 0 : i32
    return %c0_i32, %c0_i32_0 : i32, i32
  }
  func.func @transform_4(%arg0: i32, %arg1: i32) -> (i32, i32) {
    %c0_i32 = arith.constant 0 : i32
    %c0_i32_0 = arith.constant 0 : i32
    %c0_i32_1 = arith.constant 0 : i32
    return %c0_i32, %c0_i32_0 : i32, i32
  }
  func.func @transform_5(%arg0: i32, %arg1: i32) -> (i32, i32, i32) {
    %c0_i32 = arith.constant 0 : i32
    %c0_i32_0 = arith.constant 0 : i32
    return %arg1, %arg0, %c0_i32 : i32, i32, i32
  }
  func.func @transform_6(%arg0: i32, %arg1: i32) -> (i32, i32) {
    %c0_i32 = arith.constant 0 : i32
    %c0_i32_0 = arith.constant 0 : i32
    return %arg0, %c0_i32 : i32, i32
  }
  func.func @transform_7(%arg0: i32, %arg1: i32) -> (i32, i32) {
    %c0_i32 = arith.constant 0 : i32
    %c0_i32_0 = arith.constant 0 : i32
    return %arg0, %c0_i32 : i32, i32
  }
}

</mosaic_0001>

<llo_original>
// kernel: tpu_custom_call.1
$region0: #{tpu_custom_call.1}
  #allocation0 [shape = 'u32[]', space=smem, size = 0x4, offset = 0x4, fixed_abs, tag = 'smem constant byte address 0x4 - core index']
  #allocation1 [shape = 'u32[144,128]{1,0:T(1,128)}', space=vmem, size = 0x12000, scoped, tag = 'internal scratch']
  #allocation2 [shape = 'f32[8,8,512]{2,1,0:T(8,128)}', space=vmem, size = 0x20000, scoped, tag = 'scratch operand']
  #allocation3 [shape = 'f32[8,128]{1,0:T(8,128)}', space=vmem, size = 0x1000, scoped, tag = 'scratch operand']
  #allocation4 [shape = 'f32[8,128]{1,0:T(8,128)}', space=vmem, size = 0x1000, scoped, tag = 'scratch operand']
  %s0 = inlined_call_operand.vmem [shape: s32[8,1], index: 0, kind: input, shape index: {}]
  %s1 = inlined_call_operand.hbm [shape: f32[8,8,128], index: 1, kind: input, shape index: {}]
  %s2 = inlined_call_operand.hbm [shape: f32[128,512], index: 2, kind: input, shape index: {}]
  %s3 = inlined_call_operand.hbm [shape: f32[128,512], index: 3, kind: input, shape index: {}]
  %s4 = inlined_call_operand.vmem [shape: f32[1,512], index: 4, kind: input, shape index: {}]
  %s5 = inlined_call_operand.hbm [shape: f32[8,8,128], index: 5, kind: output, shape index: {0}]
  %s6 = inlined_call_operand.hbm [shape: f32[8,128], index: 6, kind: output, shape index: {1}]
  %s7 = inlined_call_operand.hbm [shape: f32[8,128], index: 7, kind: output, shape index: {2}]
  %8 = xla_tuple %s5, %s6, %s7
  %s9 = sld [smem:[#allocation0]]
  $region66: #{tpu_custom_call.1} parent=0
    _
  %s11 = ssub.s32 1, %s9
  %s12 = scalar_select 0, %s11, %s9
  $region1: #{tpu_custom_call.1} parent=0
    #allocation5 [shape = 'u8[32768]{0}', space=vmem, size = 0x8000, scoped, tag = 'input window, operand 1, single buffered']
    #allocation6 [shape = 's32[1]{0}', space=sflag, size = 0x4, scoped, tag = 'scoped memory for tpu_custom_call.1']
    #allocation7 [shape = 's32[1]{0}', space=sflag, size = 0x4, scoped, tag = 'scoped memory for tpu_custom_call.1']
    #allocation8 [shape = 'u8[262144]{0}', space=vmem, size = 0x40000, scoped, tag = 'input window, operand 2, single buffered']
    #allocation9 [shape = 's32[1]{0}', space=sflag, size = 0x4, scoped, tag = 'scoped memory for tpu_custom_call.1']
    #allocation10 [shape = 'u8[262144]{0}', space=vmem, size = 0x40000, scoped, tag = 'input window, operand 3, single buffered']
    #allocation11 [shape = 'u8[32768]{0}', space=vmem, size = 0x8000, scoped, tag = 'output window, operand 0, single buffered']
    #allocation12 [shape = 'u8[4096]{0}', space=vmem, size = 0x1000, scoped, tag = 'output window, operand 1, single buffered']
    #allocation13 [shape = 's32[1]{0}', space=sflag, size = 0x4, scoped, tag = 'scoped memory for tpu_custom_call.1']
    #allocation14 [shape = 'u8[4096]{0}', space=vmem, size = 0x1000, scoped, tag = 'output window, operand 2, single buffered']
    %13 = vsyncpa [#allocation6], 0
    %14 = vsyncpa [#allocation9], 0
    %15 = vsyncpa [#allocation7], 0
    %16 = vsyncpa [#allocation13], 0
    // Predicated region
    $region2: #{tpu_custom_call.1} parent=1 // pred_check
      _
    $region3: #{tpu_custom_call.1} parent=1 // pred_check_branch
      %18 = sbr.rel (0) target = $region5
    $region4: #{tpu_custom_call.1} parent=1 // pred_region
      _
    $region5: #{tpu_custom_call.1} parent=1 // pred_fallthru
      _
    // Predicated region
    $region6: #{tpu_custom_call.1} parent=1 // pred_check
      _
    $region7: #{tpu_custom_call.1} parent=1 // pred_check_branch
      %20 = sbr.rel (0) target = $region9
    $region8: #{tpu_custom_call.1} parent=1 // pred_region
      %s22 = ssub.s32 1024, 1024
      %23 = vsyncadd [#allocation6], %s22
      %s24 = sshll.u32 [#allocation5], 4
      %s25 = int_to_ptr.vmem [resolvable:$true] %s24
      %30 = dma.hbm_to_vmem [thread:$0]  %s1, 1024, %s25, [#allocation6], 128, 128, 8
    $region9: #{tpu_custom_call.1} parent=1 // pred_fallthru
      _
    // Predicated region
    $region10: #{tpu_custom_call.1} parent=1 // pred_check
      _
    $region11: #{tpu_custom_call.1} parent=1 // pred_check_branch
      %32 = sbr.rel (0) target = $region13
    $region12: #{tpu_custom_call.1} parent=1 // pred_region
      %s34 = ssub.s32 8192, 8192
      %35 = vsyncadd [#allocation9], %s34
      %s36 = sshll.u32 [#allocation8], 4
      %s37 = int_to_ptr.vmem [resolvable:$true] %s36
      %42 = dma.hbm_to_vmem [thread:$0]  %s2, 8192, %s37, [#allocation9], 512, 512, 32
    $region13: #{tpu_custom_call.1} parent=1 // pred_fallthru
      _
    // Predicated region
    $region14: #{tpu_custom_call.1} parent=1 // pred_check
      _
    $region15: #{tpu_custom_call.1} parent=1 // pred_check_branch
      %44 = sbr.rel (0) target = $region17
    $region16: #{tpu_custom_call.1} parent=1 // pred_region
      %s46 = ssub.s32 8192, 8192
      %47 = vsyncadd [#allocation9], %s46
      %s48 = sshll.u32 [#allocation10], 4
      %s49 = int_to_ptr.vmem [resolvable:$true] %s48
      %54 = dma.hbm_to_vmem [thread:$0]  %s3, 8192, %s49, [#allocation9], 512, 512, 32
    $region17: #{tpu_custom_call.1} parent=1 // pred_fallthru
      _
    // Predicated region
    $region18: #{tpu_custom_call.1} parent=1 // pred_check
      _
    $region19: #{tpu_custom_call.1} parent=1 // pred_check_branch
      %56 = sbr.rel (0) target = $region21
    $region20: #{tpu_custom_call.1} parent=1 // pred_region
      _
    $region21: #{tpu_custom_call.1} parent=1 // pred_fallthru
      _
    // Predicated region
    $region22: #{tpu_custom_call.1} parent=1 // pred_check
      _
    $region23: #{tpu_custom_call.1} parent=1 // pred_check_branch
      %58 = sbr.rel (0) target = $region25
    $region24: #{tpu_custom_call.1} parent=1 // pred_region
      %59 = dma.done [#allocation6], 1024
    $region25: #{tpu_custom_call.1} parent=1 // pred_fallthru
      _
    // Predicated region
    $region26: #{tpu_custom_call.1} parent=1 // pred_check
      _
    $region27: #{tpu_custom_call.1} parent=1 // pred_check_branch
      %61 = sbr.rel (0) target = $region29
    $region28: #{tpu_custom_call.1} parent=1 // pred_region
      %62 = dma.done [#allocation9], 8192
    $region29: #{tpu_custom_call.1} parent=1 // pred_fallthru
      _
    // Predicated region
    $region30: #{tpu_custom_call.1} parent=1 // pred_check
      _
    $region31: #{tpu_custom_call.1} parent=1 // pred_check_branch
      %64 = sbr.rel (0) target = $region33
    $region32: #{tpu_custom_call.1} parent=1 // pred_region
      %65 = dma.done [#allocation9], 8192
    $region33: #{tpu_custom_call.1} parent=1 // pred_fallthru
      _
    %p66 = scmp.eq.s32.totalorder 0, 0
    // Predicated region
    $region34: #{tpu_custom_call.1} parent=1 // pred_check
      %p67 = pneg %p66
    $region35: #{tpu_custom_call.1} parent=1 // pred_check_branch
      %69 = sbr.rel (%p67) target = $region37
    $region36: #{tpu_custom_call.1} parent=1 // pred_region
      %70 = vst [vmem:[#allocation3] sm:$0xff] 0.0
      %71 = vst [vmem:[#allocation4] sm:$0xff] 0.0
    $region37: #{tpu_custom_call.1} parent=1 // pred_fallthru
      _
    %v72 = vld [vmem:[#allocation5] sm:$0xff]
    %v73 = vld [vmem:[#allocation5 + $0x8] sm:$0xff]
    %v74 = vld [vmem:[#allocation5 + $0x10] sm:$0xff]
    %v75 = vld [vmem:[#allocation5 + $0x18] sm:$0xff]
    %v76 = vld [vmem:[#allocation5 + $0x20] sm:$0xff]
    %v77 = vld [vmem:[#allocation5 + $0x28] sm:$0xff]
    %v78 = vld [vmem:[#allocation5 + $0x30] sm:$0xff]
    %v79 = vld [vmem:[#allocation5 + $0x38] sm:$0xff]
    %v80 = vld [vmem:[#allocation8] sm:$0xff]
    %v81 = vld [vmem:[#allocation8 + $0x8] sm:$0xff]
    %v82 = vld [vmem:[#allocation8 + $0x10] sm:$0xff]
    %v83 = vld [vmem:[#allocation8 + $0x18] sm:$0xff]
    %v84 = vld [vmem:[#allocation8 + $0x20] sm:$0xff]
    %v85 = vld [vmem:[#allocation8 + $0x28] sm:$0xff]
    %v86 = vld [vmem:[#allocation8 + $0x30] sm:$0xff]
    %v87 = vld [vmem:[#allocation8 + $0x38] sm:$0xff]
    %v88 = vld [vmem:[#allocation8 + $0x40] sm:$0xff]
    %v89 = vld [vmem:[#allocation8 + $0x48] sm:$0xff]
    %v90 = vld [vmem:[#allocation8 + $0x50] sm:$0xff]
    %v91 = vld [vmem:[#allocation8 + $0x58] sm:$0xff]
    %v92 = vld [vmem:[#allocation8 + $0x60] sm:$0xff]
    %v93 = vld [vmem:[#allocation8 + $0x68] sm:$0xff]
    %v94 = vld [vmem:[#allocation8 + $0x70] sm:$0xff]
    %v95 = vld [vmem:[#allocation8 + $0x78] sm:$0xff]
    %v96 = vld [vmem:[#allocation8 + $0x80] sm:$0xff]
    %v97 = vld [vmem:[#allocation8 + $0x88] sm:$0xff]
    %v98 = vld [vmem:[#allocation8 + $0x90] sm:$0xff]
    %v99 = vld [vmem:[#allocation8 + $0x98] sm:$0xff]
    %v100 = vld [vmem:[#allocation8 + $0xa0] sm:$0xff]
    %v101 = vld [vmem:[#allocation8 + $0xa8] sm:$0xff]
    %v102 = vld [vmem:[#allocation8 + $0xb0] sm:$0xff]
    %v103 = vld [vmem:[#allocation8 + $0xb8] sm:$0xff]
    %v104 = vld [vmem:[#allocation8 + $0xc0] sm:$0xff]
    %v105 = vld [vmem:[#allocation8 + $0xc8] sm:$0xff]
    %v106 = vld [vmem:[#allocation8 + $0xd0] sm:$0xff]
    %v107 = vld [vmem:[#allocation8 + $0xd8] sm:$0xff]
    %v108 = vld [vmem:[#allocation8 + $0xe0] sm:$0xff]
    %v109 = vld [vmem:[#allocation8 + $0xe8] sm:$0xff]
    %v110 = vld [vmem:[#allocation8 + $0xf0] sm:$0xff]
    %v111 = vld [vmem:[#allocation8 + $0xf8] sm:$0xff]
    %v112 = vld [vmem:[#allocation8 + $0x100] sm:$0xff]
    %v113 = vld [vmem:[#allocation8 + $0x108] sm:$0xff]
    %v114 = vld [vmem:[#allocation8 + $0x110] sm:$0xff]
    %v115 = vld [vmem:[#allocation8 + $0x118] sm:$0xff]
    %v116 = vld [vmem:[#allocation8 + $0x120] sm:$0xff]
    %v117 = vld [vmem:[#allocation8 + $0x128] sm:$0xff]
    %v118 = vld [vmem:[#allocation8 + $0x130] sm:$0xff]
    %v119 = vld [vmem:[#allocation8 + $0x138] sm:$0xff]
    %v120 = vld [vmem:[#allocation8 + $0x140] sm:$0xff]
    %v121 = vld [vmem:[#allocation8 + $0x148] sm:$0xff]
    %v122 = vld [vmem:[#allocation8 + $0x150] sm:$0xff]
    %v123 = vld [vmem:[#allocation8 + $0x158] sm:$0xff]
    %v124 = vld [vmem:[#allocation8 + $0x160] sm:$0xff]
    %v125 = vld [vmem:[#allocation8 + $0x168] sm:$0xff]
    %v126 = vld [vmem:[#allocation8 + $0x170] sm:$0xff]
    %v127 = vld [vmem:[#allocation8 + $0x178] sm:$0xff]
    %v128 = vld [vmem:[#allocation8 + $0x180] sm:$0xff]
    %v129 = vld [vmem:[#allocation8 + $0x188] sm:$0xff]
    %v130 = vld [vmem:[#allocation8 + $0x190] sm:$0xff]
    %v131 = vld [vmem:[#allocation8 + $0x198] sm:$0xff]
    %v132 = vld [vmem:[#allocation8 + $0x1a0] sm:$0xff]
    %v133 = vld [vmem:[#allocation8 + $0x1a8] sm:$0xff]
    %v134 = vld [vmem:[#allocation8 + $0x1b0] sm:$0xff]
    %v135 = vld [vmem:[#allocation8 + $0x1b8] sm:$0xff]
    %v136 = vld [vmem:[#allocation8 + $0x1c0] sm:$0xff]
    %v137 = vld [vmem:[#allocation8 + $0x1c8] sm:$0xff]
    %v138 = vld [vmem:[#allocation8 + $0x1d0] sm:$0xff]
    %v139 = vld [vmem:[#allocation8 + $0x1d8] sm:$0xff]
    %v140 = vld [vmem:[#allocation8 + $0x1e0] sm:$0xff]
    %v141 = vld [vmem:[#allocation8 + $0x1e8] sm:$0xff]
    %v142 = vld [vmem:[#allocation8 + $0x1f0] sm:$0xff]
    %v143 = vld [vmem:[#allocation8 + $0x1f8] sm:$0xff]
    %v144 = vld [vmem:[%s4] sm:$0xf]
    %v146 = vlaneseq
    %v147 = vshrl.u32 %v146, 7
    %v148 = vsub.s32 0, %v147
    %v149 = vrot.slane %v144, %v148
    %v150 = vlaneseq
    %v151 = vshrl.u32 %v150, 7
    %v152 = vsub.s32 1, %v151
    %v153 = vrot.slane %v144, %v152
    %v154 = vlaneseq
    %v155 = vshrl.u32 %v154, 7
    %v156 = vsub.s32 2, %v155
    %v157 = vrot.slane %v144, %v156
    %v158 = vlaneseq
    %v159 = vshrl.u32 %v158, 7
    %v160 = vsub.s32 3, %v159
    %v161 = vrot.slane %v144, %v160
    %166 = vmatprep.subr.mxu0 %v141
    %167 = vmatpush1.msra.mxu0 %v140
    %168 = vmatprep.subr.mxu0 %v137
    %169 = vmatpush1.msra.mxu0 %v136
    %170 = vmatprep.subr.mxu0 %v133
    %171 = vmatpush1.msra.mxu0 %v132
    %172 = vmatprep.subr.mxu0 %v129
    %173 = vmatpush1.msra.mxu0 %v128
    %174 = vmatprep.subr.mxu0 %v125
    %175 = vmatpush1.msra.mxu0 %v124
    %176 = vmatprep.subr.mxu0 %v121
    %177 = vmatpush1.msra.mxu0 %v120
    %178 = vmatprep.subr.mxu0 %v117
    %179 = vmatpush1.msra.mxu0 %v116
    %180 = vmatprep.subr.mxu0 %v113
    %181 = vmatpush1.msra.mxu0 %v112
    %182 = vmatprep.subr.mxu0 %v109
    %183 = vmatpush1.msra.mxu0 %v108
    %184 = vmatprep.subr.mxu0 %v105
    %185 = vmatpush1.msra.mxu0 %v104
    %186 = vmatprep.subr.mxu0 %v101
    %187 = vmatpush1.msra.mxu0 %v100
    %188 = vmatprep.subr.mxu0 %v97
    %189 = vmatpush1.msra.mxu0 %v96
    %190 = vmatprep.subr.mxu0 %v93
    %191 = vmatpush1.msra.mxu0 %v92
    %192 = vmatprep.subr.mxu0 %v89
    %193 = vmatpush1.msra.mxu0 %v88
    %194 = vmatprep.subr.mxu0 %v85
    %195 = vmatpush1.msra.mxu0 %v84
    %196 = vmatprep.subr.mxu0 %v81
    %197 = vmatpush1.msra.mxu0 %v80
    %198 = vmatprep.subr.mxu0 0.0
    %199 = vmatpush2.msra.mxu0 0.0
    %200 = vmatprep.subr.mxu0 0.0
    %201 = vmatpush2.msra.mxu0 0.0
    %202 = vmatprep.subr.mxu0 0.0
    %203 = vmatpush2.msra.mxu0 0.0
    %204 = vmatprep.subr.mxu0 0.0
    %205 = vmatpush2.msra.mxu0 0.0
    %206 = vmatprep.subr.mxu0 0.0
    %207 = vmatpush2.msra.mxu0 0.0
    %208 = vmatprep.subr.mxu0 0.0
    %209 = vmatpush2.msra.mxu0 0.0
    %210 = vmatprep.subr.mxu0 0.0
    %211 = vmatpush2.msra.mxu0 0.0
    %212 = vmatprep.subr.mxu0 0.0
    %213 = vmatpush2.msra.mxu0 0.0
    %214 = vmatprep.subr.mxu0 0.0
    %215 = vmatpush2.msra.mxu0 0.0
    %216 = vmatprep.subr.mxu0 0.0
    %217 = vmatpush2.msra.mxu0 0.0
    %218 = vmatprep.subr.mxu0 0.0
    %219 = vmatpush2.msra.mxu0 0.0
    %220 = vmatprep.subr.mxu0 0.0
    %221 = vmatpush2.msra.mxu0 0.0
    %222 = vmatprep.subr.mxu0 0.0
    %223 = vmatpush2.msra.mxu0 0.0
    %224 = vmatprep.subr.mxu0 0.0
    %225 = vmatpush2.msra.mxu0 0.0
    %226 = vmatprep.subr.mxu0 0.0
    %227 = vmatpush2.msra.mxu0 0.0
    %228 = vmatprep.subr.mxu0 0.0
    %229 = vmatpush2.msra.mxu0 0.0
    %230 = vmatprep.mubr.f32.mxu0 0.0
    %231 = vmatmul.mubr.f32.gmra.mxu0 %v72
    %v232 = vpop.f32.mrf.mxu0
    %v233 = vadd.f32 %v149, %v232
    %v234 = vpop.f32.mrf.mxu0
    %v235 = vadd.f32 %v153, %v234
    %236 = vmatprep.mubr.f32.mxu0 0.0
    %237 = vmatmul.mubr.f32.gmra.mxu0 %v73
    %v238 = vpop.f32.mrf.mxu0
    %v239 = vadd.f32 %v149, %v238
    %v240 = vpop.f32.mrf.mxu0
    %v241 = vadd.f32 %v153, %v240
    %242 = vmatprep.mubr.f32.mxu0 0.0
    %243 = vmatmul.mubr.f32.gmra.mxu0 %v74
    %v244 = vpop.f32.mrf.mxu0
    %v245 = vadd.f32 %v149, %v244
    %v246 = vpop.f32.mrf.mxu0
    %v247 = vadd.f32 %v153, %v246
    %248 = vmatprep.mubr.f32.mxu0 0.0
    %249 = vmatmul.mubr.f32.gmra.mxu0 %v75
    %v250 = vpop.f32.mrf.mxu0
    %v251 = vadd.f32 %v149, %v250
    %v252 = vpop.f32.mrf.mxu0
    %v253 = vadd.f32 %v153, %v252
    %254 = vmatprep.mubr.f32.mxu0 0.0
    %255 = vmatmul.mubr.f32.gmra.mxu0 %v76
    %v256 = vpop.f32.mrf.mxu0
    %v257 = vadd.f32 %v149, %v256
    %v258 = vpop.f32.mrf.mxu0
    %v259 = vadd.f32 %v153, %v258
    %260 = vmatprep.mubr.f32.mxu0 0.0
    %261 = vmatmul.mubr.f32.gmra.mxu0 %v77
    %v262 = vpop.f32.mrf.mxu0
    %v263 = vadd.f32 %v149, %v262
    %v264 = vpop.f32.mrf.mxu0
    %v265 = vadd.f32 %v153, %v264
    %266 = vmatprep.mubr.f32.mxu0 0.0
    %267 = vmatmul.mubr.f32.gmra.mxu0 %v78
    %v268 = vpop.f32.mrf.mxu0
    %v269 = vadd.f32 %v149, %v268
    %v270 = vpop.f32.mrf.mxu0
    %v271 = vadd.f32 %v153, %v270
    %272 = vmatprep.mubr.f32.mxu0 0.0
    %273 = vmatmul.mubr.f32.gmra.mxu0 %v79
    %v274 = vpop.f32.mrf.mxu0
    %v275 = vadd.f32 %v149, %v274
    %v276 = vpop.f32.mrf.mxu0
    %v277 = vadd.f32 %v153, %v276
    %278 = vdwg.mxu0
    %279 = vmatprep.subr.mxu0 %v143
    %280 = vmatpush1.msra.mxu0 %v142
    %281 = vmatprep.subr.mxu0 %v139
    %282 = vmatpush1.msra.mxu0 %v138
    %283 = vmatprep.subr.mxu0 %v135
    %284 = vmatpush1.msra.mxu0 %v134
    %285 = vmatprep.subr.mxu0 %v131
    %286 = vmatpush1.msra.mxu0 %v130
    %287 = vmatprep.subr.mxu0 %v127
    %288 = vmatpush1.msra.mxu0 %v126
    %289 = vmatprep.subr.mxu0 %v123
    %290 = vmatpush1.msra.mxu0 %v122
    %291 = vmatprep.subr.mxu0 %v119
    %292 = vmatpush1.msra.mxu0 %v118
    %293 = vmatprep.subr.mxu0 %v115
    %294 = vmatpush1.msra.mxu0 %v114
    %295 = vmatprep.subr.mxu0 %v111
    %296 = vmatpush1.msra.mxu0 %v110
    %297 = vmatprep.subr.mxu0 %v107
    %298 = vmatpush1.msra.mxu0 %v106
    %299 = vmatprep.subr.mxu0 %v103
    %300 = vmatpush1.msra.mxu0 %v102
    %301 = vmatprep.subr.mxu0 %v99
    %302 = vmatpush1.msra.mxu0 %v98
    %303 = vmatprep.subr.mxu0 %v95
    %304 = vmatpush1.msra.mxu0 %v94
    %305 = vmatprep.subr.mxu0 %v91
    %306 = vmatpush1.msra.mxu0 %v90
    %307 = vmatprep.subr.mxu0 %v87
    %308 = vmatpush1.msra.mxu0 %v86
    %309 = vmatprep.subr.mxu0 %v83
    %310 = vmatpush1.msra.mxu0 %v82
    %311 = vmatprep.subr.mxu0 0.0
    %312 = vmatpush2.msra.mxu0 0.0
    %313 = vmatprep.subr.mxu0 0.0
    %314 = vmatpush2.msra.mxu0 0.0
    %315 = vmatprep.subr.mxu0 0.0
    %316 = vmatpush2.msra.mxu0 0.0
    %317 = vmatprep.subr.mxu0 0.0
    %318 = vmatpush2.msra.mxu0 0.0
    %319 = vmatprep.subr.mxu0 0.0
    %320 = vmatpush2.msra.mxu0 0.0
    %321 = vmatprep.subr.mxu0 0.0
    %322 = vmatpush2.msra.mxu0 0.0
    %323 = vmatprep.subr.mxu0 0.0
    %324 = vmatpush2.msra.mxu0 0.0
    %325 = vmatprep.subr.mxu0 0.0
    %326 = vmatpush2.msra.mxu0 0.0
    %327 = vmatprep.subr.mxu0 0.0
    %328 = vmatpush2.msra.mxu0 0.0
    %329 = vmatprep.subr.mxu0 0.0
    %330 = vmatpush2.msra.mxu0 0.0
    %331 = vmatprep.subr.mxu0 0.0
    %332 = vmatpush2.msra.mxu0 0.0
    %333 = vmatprep.subr.mxu0 0.0
    %334 = vmatpush2.msra.mxu0 0.0
    %335 = vmatprep.subr.mxu0 0.0
    %336 = vmatpush2.msra.mxu0 0.0
    %337 = vmatprep.subr.mxu0 0.0
    %338 = vmatpush2.msra.mxu0 0.0
    %339 = vmatprep.subr.mxu0 0.0
    %340 = vmatpush2.msra.mxu0 0.0
    %341 = vmatprep.subr.mxu0 0.0
    %342 = vmatpush2.msra.mxu0 0.0
    %343 = vmatprep.mubr.f32.mxu0 0.0
    %344 = vmatmul.mubr.f32.gmra.mxu0 %v72
    %v345 = vpop.f32.mrf.mxu0
    %v346 = vadd.f32 %v157, %v345
    %v347 = vpop.f32.mrf.mxu0
    %v348 = vadd.f32 %v161, %v347
    %349 = vmatprep.mubr.f32.mxu0 0.0
    %350 = vmatmul.mubr.f32.gmra.mxu0 %v73
    %v351 = vpop.f32.mrf.mxu0
    %v352 = vadd.f32 %v157, %v351
    %v353 = vpop.f32.mrf.mxu0
    %v354 = vadd.f32 %v161, %v353
    %355 = vmatprep.mubr.f32.mxu0 0.0
    %356 = vmatmul.mubr.f32.gmra.mxu0 %v74
    %v357 = vpop.f32.mrf.mxu0
    %v358 = vadd.f32 %v157, %v357
    %v359 = vpop.f32.mrf.mxu0
    %v360 = vadd.f32 %v161, %v359
    %361 = vmatprep.mubr.f32.mxu0 0.0
    %362 = vmatmul.mubr.f32.gmra.mxu0 %v75
    %v363 = vpop.f32.mrf.mxu0
    %v364 = vadd.f32 %v157, %v363
    %v365 = vpop.f32.mrf.mxu0
    %v366 = vadd.f32 %v161, %v365
    %367 = vmatprep.mubr.f32.mxu0 0.0
    %368 = vmatmul.mubr.f32.gmra.mxu0 %v76
    %v369 = vpop.f32.mrf.mxu0
    %v370 = vadd.f32 %v157, %v369
    %v371 = vpop.f32.mrf.mxu0
    %v372 = vadd.f32 %v161, %v371
    %373 = vmatprep.mubr.f32.mxu0 0.0
    %374 = vmatmul.mubr.f32.gmra.mxu0 %v77
    %v375 = vpop.f32.mrf.mxu0
    %v376 = vadd.f32 %v157, %v375
    %v377 = vpop.f32.mrf.mxu0
    %v378 = vadd.f32 %v161, %v377
    %379 = vmatprep.mubr.f32.mxu0 0.0
    %380 = vmatmul.mubr.f32.gmra.mxu0 %v78
    %v381 = vpop.f32.mrf.mxu0
    %v382 = vadd.f32 %v157, %v381
    %v383 = vpop.f32.mrf.mxu0
    %v384 = vadd.f32 %v161, %v383
    %385 = vmatprep.mubr.f32.mxu0 0.0
    %386 = vmatmul.mubr.f32.gmra.mxu0 %v79
    %v387 = vpop.f32.mrf.mxu0
    %v388 = vadd.f32 %v157, %v387
    %v389 = vpop.f32.mrf.mxu0
    %v390 = vadd.f32 %v161, %v389
    %391 = vdwg.mxu0
    %392 = vst [vmem:[#allocation2] sm:$0xff] %v233
    %393 = vst [vmem:[#allocation2 + $0x8] sm:$0xff] %v235
    %394 = vst [vmem:[#allocation2 + $0x10] sm:$0xff] %v346
    %395 = vst [vmem:[#allocation2 + $0x18] sm:$0xff] %v348
    %396 = vst [vmem:[#allocation2 + $0x20] sm:$0xff] %v239
    %397 = vst [vmem:[#allocation2 + $0x28] sm:$0xff] %v241
    %398 = vst [vmem:[#allocation2 + $0x30] sm:$0xff] %v352
    %399 = vst [vmem:[#allocation2 + $0x38] sm:$0xff] %v354
    %400 = vst [vmem:[#allocation2 + $0x40] sm:$0xff] %v245
    %401 = vst [vmem:[#allocation2 + $0x48] sm:$0xff] %v247
    %402 = vst [vmem:[#allocation2 + $0x50] sm:$0xff] %v358
    %403 = vst [vmem:[#allocation2 + $0x58] sm:$0xff] %v360
    %404 = vst [vmem:[#allocation2 + $0x60] sm:$0xff] %v251
    %405 = vst [vmem:[#allocation2 + $0x68] sm:$0xff] %v253
    %406 = vst [vmem:[#allocation2 + $0x70] sm:$0xff] %v364
    %407 = vst [vmem:[#allocation2 + $0x78] sm:$0xff] %v366
    %408 = vst [vmem:[#allocation2 + $0x80] sm:$0xff] %v257
    %409 = vst [vmem:[#allocation2 + $0x88] sm:$0xff] %v259
    %410 = vst [vmem:[#allocation2 + $0x90] sm:$0xff] %v370
    %411 = vst [vmem:[#allocation2 + $0x98] sm:$0xff] %v372
    %412 = vst [vmem:[#allocation2 + $0xa0] sm:$0xff] %v263
    %413 = vst [vmem:[#allocation2 + $0xa8] sm:$0xff] %v265
    %414 = vst [vmem:[#allocation2 + $0xb0] sm:$0xff] %v376
    %415 = vst [vmem:[#allocation2 + $0xb8] sm:$0xff] %v378
    %416 = vst [vmem:[#allocation2 + $0xc0] sm:$0xff] %v269
    %417 = vst [vmem:[#allocation2 + $0xc8] sm:$0xff] %v271
    %418 = vst [vmem:[#allocation2 + $0xd0] sm:$0xff] %v382
    %419 = vst [vmem:[#allocation2 + $0xd8] sm:$0xff] %v384
    %420 = vst [vmem:[#allocation2 + $0xe0] sm:$0xff] %v275
    %421 = vst [vmem:[#allocation2 + $0xe8] sm:$0xff] %v277
    %422 = vst [vmem:[#allocation2 + $0xf0] sm:$0xff] %v388
    %423 = vst [vmem:[#allocation2 + $0xf8] sm:$0xff] %v390
    %v424 = vld [vmem:[%s0] sm:$0xff]
    %v425 = vld [vmem:[#allocation10] sm:$0xff]
    %v426 = vld [vmem:[#allocation10 + $0x8] sm:$0xff]
    %v427 = vld [vmem:[#allocation10 + $0x10] sm:$0xff]
    %v428 = vld [vmem:[#allocation10 + $0x18] sm:$0xff]
    %v429 = vld [vmem:[#allocation10 + $0x20] sm:$0xff]
    %v430 = vld [vmem:[#allocation10 + $0x28] sm:$0xff]
    %v431 = vld [vmem:[#allocation10 + $0x30] sm:$0xff]
    %v432 = vld [vmem:[#allocation10 + $0x38] sm:$0xff]
    %v433 = vld [vmem:[#allocation10 + $0x40] sm:$0xff]
    %v434 = vld [vmem:[#allocation10 + $0x48] sm:$0xff]
    %v435 = vld [vmem:[#allocation10 + $0x50] sm:$0xff]
    %v436 = vld [vmem:[#allocation10 + $0x58] sm:$0xff]
    %v437 = vld [vmem:[#allocation10 + $0x60] sm:$0xff]
    %v438 = vld [vmem:[#allocation10 + $0x68] sm:$0xff]
    %v439 = vld [vmem:[#allocation10 + $0x70] sm:$0xff]
    %v440 = vld [vmem:[#allocation10 + $0x78] sm:$0xff]
    %v441 = vld [vmem:[#allocation10 + $0x80] sm:$0xff]
    %v442 = vld [vmem:[#allocation10 + $0x88] sm:$0xff]
    %v443 = vld [vmem:[#allocation10 + $0x90] sm:$0xff]
    %v444 = vld [vmem:[#allocation10 + $0x98] sm:$0xff]
    %v445 = vld [vmem:[#allocation10 + $0xa0] sm:$0xff]
    %v446 = vld [vmem:[#allocation10 + $0xa8] sm:$0xff]
    %v447 = vld [vmem:[#allocation10 + $0xb0] sm:$0xff]
    %v448 = vld [vmem:[#allocation10 + $0xb8] sm:$0xff]
    %v449 = vld [vmem:[#allocation10 + $0xc0] sm:$0xff]
    %v450 = vld [vmem:[#allocation10 + $0xc8] sm:$0xff]
    %v451 = vld [vmem:[#allocation10 + $0xd0] sm:$0xff]
    %v452 = vld [vmem:[#allocation10 + $0xd8] sm:$0xff]
    %v453 = vld [vmem:[#allocation10 + $0xe0] sm:$0xff]
    %v454 = vld [vmem:[#allocation10 + $0xe8] sm:$0xff]
    %v455 = vld [vmem:[#allocation10 + $0xf0] sm:$0xff]
    %v456 = vld [vmem:[#allocation10 + $0xf8] sm:$0xff]
    %v457 = vld [vmem:[#allocation10 + $0x100] sm:$0xff]
    %v458 = vld [vmem:[#allocation10 + $0x108] sm:$0xff]
    %v459 = vld [vmem:[#allocation10 + $0x110] sm:$0xff]
    %v460 = vld [vmem:[#allocation10 + $0x118] sm:$0xff]
    %v461 = vld [vmem:[#allocation10 + $0x120] sm:$0xff]
    %v462 = vld [vmem:[#allocation10 + $0x128] sm:$0xff]
    %v463 = vld [vmem:[#allocation10 + $0x130] sm:$0xff]
    %v464 = vld [vmem:[#allocation10 + $0x138] sm:$0xff]
    %v465 = vld [vmem:[#allocation10 + $0x140] sm:$0xff]
    %v466 = vld [vmem:[#allocation10 + $0x148] sm:$0xff]
    %v467 = vld [vmem:[#allocation10 + $0x150] sm:$0xff]
    %v468 = vld [vmem:[#allocation10 + $0x158] sm:$0xff]
    %v469 = vld [vmem:[#allocation10 + $0x160] sm:$0xff]
    %v470 = vld [vmem:[#allocation10 + $0x168] sm:$0xff]
    %v471 = vld [vmem:[#allocation10 + $0x170] sm:$0xff]
    %v472 = vld [vmem:[#allocation10 + $0x178] sm:$0xff]
    %v473 = vld [vmem:[#allocation10 + $0x180] sm:$0xff]
    %v474 = vld [vmem:[#allocation10 + $0x188] sm:$0xff]
    %v475 = vld [vmem:[#allocation10 + $0x190] sm:$0xff]
    %v476 = vld [vmem:[#allocation10 + $0x198] sm:$0xff]
    %v477 = vld [vmem:[#allocation10 + $0x1a0] sm:$0xff]
    %v478 = vld [vmem:[#allocation10 + $0x1a8] sm:$0xff]
    %v479 = vld [vmem:[#allocation10 + $0x1b0] sm:$0xff]
    %v480 = vld [vmem:[#allocation10 + $0x1b8] sm:$0xff]
    %v481 = vld [vmem:[#allocation10 + $0x1c0] sm:$0xff]
    %v482 = vld [vmem:[#allocation10 + $0x1c8] sm:$0xff]
    %v483 = vld [vmem:[#allocation10 + $0x1d0] sm:$0xff]
    %v484 = vld [vmem:[#allocation10 + $0x1d8] sm:$0xff]
    %v485 = vld [vmem:[#allocation10 + $0x1e0] sm:$0xff]
    %v486 = vld [vmem:[#allocation10 + $0x1e8] sm:$0xff]
    %v487 = vld [vmem:[#allocation10 + $0x1f0] sm:$0xff]
    %v488 = vld [vmem:[#allocation10 + $0x1f8] sm:$0xff]
    %s489 = smul.u32 0, 8
    %v490 = vld [vmem:[#allocation3] sm:$0xff]
    %v491 = vld [vmem:[#allocation4] sm:$0xff]
    %v492 = vld [vmem:[#allocation2] sm:$0xff]
    %v493 = vld [vmem:[#allocation2 + $0x8] sm:$0xff]
    %v494 = vld [vmem:[#allocation2 + $0x10] sm:$0xff]
    %v495 = vld [vmem:[#allocation2 + $0x18] sm:$0xff]
    %496 = vmatprep.subr.mxu0 %v486
    %497 = vmatpush1.msra.mxu0 %v485
    %498 = vmatprep.subr.mxu0 %v482
    %499 = vmatpush1.msra.mxu0 %v481
    %500 = vmatprep.subr.mxu0 %v478
    %501 = vmatpush1.msra.mxu0 %v477
    %502 = vmatprep.subr.mxu0 %v474
    %503 = vmatpush1.msra.mxu0 %v473
    %504 = vmatprep.subr.mxu0 %v470
    %505 = vmatpush1.msra.mxu0 %v469
    %506 = vmatprep.subr.mxu0 %v466
    %507 = vmatpush1.msra.mxu0 %v465
    %508 = vmatprep.subr.mxu0 %v462
    %509 = vmatpush1.msra.mxu0 %v461
    %510 = vmatprep.subr.mxu0 %v458
    %511 = vmatpush1.msra.mxu0 %v457
    %512 = vmatprep.subr.mxu0 %v454
    %513 = vmatpush1.msra.mxu0 %v453
    %514 = vmatprep.subr.mxu0 %v450
    %515 = vmatpush1.msra.mxu0 %v449
    %516 = vmatprep.subr.mxu0 %v446
    %517 = vmatpush1.msra.mxu0 %v445
    %518 = vmatprep.subr.mxu0 %v442
    %519 = vmatpush1.msra.mxu0 %v441
    %520 = vmatprep.subr.mxu0 %v438
    %521 = vmatpush1.msra.mxu0 %v437
    %522 = vmatprep.subr.mxu0 %v434
    %523 = vmatpush1.msra.mxu0 %v433
    %524 = vmatprep.subr.mxu0 %v430
    %525 = vmatpush1.msra.mxu0 %v429
    %526 = vmatprep.subr.mxu0 %v426
    %527 = vmatpush1.msra.mxu0 %v425
    %528 = vmatprep.subr.mxu0 0.0
    %529 = vmatpush2.msra.mxu0 0.0
    %530 = vmatprep.subr.mxu0 0.0
    %531 = vmatpush2.msra.mxu0 0.0
    %532 = vmatprep.subr.mxu0 0.0
    %533 = vmatpush2.msra.mxu0 0.0
    %534 = vmatprep.subr.mxu0 0.0
    %535 = vmatpush2.msra.mxu0 0.0
    %536 = vmatprep.subr.mxu0 0.0
    %537 = vmatpush2.msra.mxu0 0.0
    %538 = vmatprep.subr.mxu0 0.0
    %539 = vmatpush2.msra.mxu0 0.0
    %540 = vmatprep.subr.mxu0 0.0
    %541 = vmatpush2.msra.mxu0 0.0
    %542 = vmatprep.subr.mxu0 0.0
    %543 = vmatpush2.msra.mxu0 0.0
    %544 = vmatprep.subr.mxu0 0.0
    %545 = vmatpush2.msra.mxu0 0.0
    %546 = vmatprep.subr.mxu0 0.0
    %547 = vmatpush2.msra.mxu0 0.0
    %548 = vmatprep.subr.mxu0 0.0
    %549 = vmatpush2.msra.mxu0 0.0
    %550 = vmatprep.subr.mxu0 0.0
    %551 = vmatpush2.msra.mxu0 0.0
    %552 = vmatprep.subr.mxu0 0.0
    %553 = vmatpush2.msra.mxu0 0.0
    %554 = vmatprep.subr.mxu0 0.0
    %555 = vmatpush2.msra.mxu0 0.0
    %556 = vmatprep.subr.mxu0 0.0
    %557 = vmatpush2.msra.mxu0 0.0
    %558 = vmatprep.subr.mxu0 0.0
    %559 = vmatpush2.msra.mxu0 0.0
    %560 = vmatprep.mubr.f32.mxu0 0.0
    %561 = vmatmul.mubr.f32.gmra.mxu0 %v490
    %v562 = vpop.f32.mrf.mxu0
    %v563 = vadd.f32 0.0, %v562
    %v564 = vpop.f32.mrf.mxu0
    %v565 = vadd.f32 0.0, %v564
    %566 = vdwg.mxu0
    %567 = vmatprep.subr.mxu0 %v488
    %568 = vmatpush1.msra.mxu0 %v487
    %569 = vmatprep.subr.mxu0 %v484
    %570 = vmatpush1.msra.mxu0 %v483
    %571 = vmatprep.subr.mxu0 %v480
    %572 = vmatpush1.msra.mxu0 %v479
    %573 = vmatprep.subr.mxu0 %v476
    %574 = vmatpush1.msra.mxu0 %v475
    %575 = vmatprep.subr.mxu0 %v472
    %576 = vmatpush1.msra.mxu0 %v471
    %577 = vmatprep.subr.mxu0 %v468
    %578 = vmatpush1.msra.mxu0 %v467
    %579 = vmatprep.subr.mxu0 %v464
    %580 = vmatpush1.msra.mxu0 %v463
    %581 = vmatprep.subr.mxu0 %v460
    %582 = vmatpush1.msra.mxu0 %v459
    %583 = vmatprep.subr.mxu0 %v456
    %584 = vmatpush1.msra.mxu0 %v455
    %585 = vmatprep.subr.mxu0 %v452
    %586 = vmatpush1.msra.mxu0 %v451
    %587 = vmatprep.subr.mxu0 %v448
    %588 = vmatpush1.msra.mxu0 %v447
    %589 = vmatprep.subr.mxu0 %v444
    %590 = vmatpush1.msra.mxu0 %v443
    %591 = vmatprep.subr.mxu0 %v440
    %592 = vmatpush1.msra.mxu0 %v439
    %593 = vmatprep.subr.mxu0 %v436
    %594 = vmatpush1.msra.mxu0 %v435
    %595 = vmatprep.subr.mxu0 %v432
    %596 = vmatpush1.msra.mxu0 %v431
    %597 = vmatprep.subr.mxu0 %v428
    %598 = vmatpush1.msra.mxu0 %v427
    %599 = vmatprep.subr.mxu0 0.0
    %600 = vmatpush2.msra.mxu0 0.0
    %601 = vmatprep.subr.mxu0 0.0
    %602 = vmatpush2.msra.mxu0 0.0
    %603 = vmatprep.subr.mxu0 0.0
    %604 = vmatpush2.msra.mxu0 0.0
    %605 = vmatprep.subr.mxu0 0.0
    %606 = vmatpush2.msra.mxu0 0.0
    %607 = vmatprep.subr.mxu0 0.0
    %608 = vmatpush2.msra.mxu0 0.0
    %609 = vmatprep.subr.mxu0 0.0
    %610 = vmatpush2.msra.mxu0 0.0
    %611 = vmatprep.subr.mxu0 0.0
    %612 = vmatpush2.msra.mxu0 0.0
    %613 = vmatprep.subr.mxu0 0.0
    %614 = vmatpush2.msra.mxu0 0.0
    %615 = vmatprep.subr.mxu0 0.0
    %616 = vmatpush2.msra.mxu0 0.0
    %617 = vmatprep.subr.mxu0 0.0
    %618 = vmatpush2.msra.mxu0 0.0
    %619 = vmatprep.subr.mxu0 0.0
    %620 = vmatpush2.msra.mxu0 0.0
    %621 = vmatprep.subr.mxu0 0.0
    %622 = vmatpush2.msra.mxu0 0.0
    %623 = vmatprep.subr.mxu0 0.0
    %624 = vmatpush2.msra.mxu0 0.0
    %625 = vmatprep.subr.mxu0 0.0
    %626 = vmatpush2.msra.mxu0 0.0
    %627 = vmatprep.subr.mxu0 0.0
    %628 = vmatpush2.msra.mxu0 0.0
    %629 = vmatprep.subr.mxu0 0.0
    %630 = vmatpush2.msra.mxu0 0.0
    %631 = vmatprep.mubr.f32.mxu0 0.0
    %632 = vmatmul.mubr.f32.gmra.mxu0 %v490
    %v633 = vpop.f32.mrf.mxu0
    %v634 = vadd.f32 0.0, %v633
    %v635 = vpop.f32.mrf.mxu0
    %v636 = vadd.f32 0.0, %v635
    %637 = vdwg.mxu0
    %v638 = vadd.f32 %v492, %v563
    %v639 = vadd.f32 %v493, %v565
    %v640 = vadd.f32 %v494, %v634
    %v641 = vadd.f32 %v495, %v636
    %v642 = vmul.f32 %v638, 0.5
    %v643 = vtanh.pop %v642
    %v644 = vadd.f32 %v643, 1.0
    %v645 = vmul.f32 %v644, 0.5
    %v646 = vmul.f32 %v639, 0.5
    %v647 = vtanh.pop %v646
    %v648 = vadd.f32 %v647, 1.0
    %v649 = vmul.f32 %v648, 0.5
    %v650 = vtanh.pop %v640
    %v651 = vmul.f32 %v641, 0.5
    %v652 = vtanh.pop %v651
    %v653 = vadd.f32 %v652, 1.0
    %v654 = vmul.f32 %v653, 0.5
    %v655 = vmul.f32 %v649, %v491
    %v656 = vmul.f32 %v645, %v650
    %v657 = vadd.f32 %v655, %v656
    %v658 = vtanh.pop %v657
    %v659 = vmul.f32 %v654, %v658
    %v660 = vstv %s489
    %vm661 = vcmp.gt.s32.totalorder %v424, %v660
    %v662 = vsel %vm661, 1, 0
    %663 = vset.pattern.permute.xlu0 0
    %664 = vperm.xlu0 %663, %v662
    %v665 = vpop.permute.xlu0 %664
    %vm666 = vcmp.eq.s32.totalorder %v665, 1
    %v667 = vsel %vm666, %v659, 0.0
    %668 = vst [vmem:[#allocation11] sm:$0xff] %v667
    %v669 = vsel %vm666, %v659, %v490
    %v670 = vsel %vm666, %v657, %v491
    %s671 = scalar_lea.vmem [#allocation2], 32
    %v672 = vld [vmem:[%s671] sm:$0xff]
    %v673 = vld [vmem:[%s671 + $0x8] sm:$0xff]
    %v674 = vld [vmem:[%s671 + $0x10] sm:$0xff]
    %v675 = vld [vmem:[%s671 + $0x18] sm:$0xff]
    %676 = vmatprep.subr.mxu0 %v486
    %677 = vmatpush1.msra.mxu0 %v485
    %678 = vmatprep.subr.mxu0 %v482
    %679 = vmatpush1.msra.mxu0 %v481
    %680 = vmatprep.subr.mxu0 %v478
    %681 = vmatpush1.msra.mxu0 %v477
    %682 = vmatprep.subr.mxu0 %v474
    %683 = vmatpush1.msra.mxu0 %v473
    %684 = vmatprep.subr.mxu0 %v470
    %685 = vmatpush1.msra.mxu0 %v469
    %686 = vmatprep.subr.mxu0 %v466
    %687 = vmatpush1.msra.mxu0 %v465
    %688 = vmatprep.subr.mxu0 %v462
    %689 = vmatpush1.msra.mxu0 %v461
    %690 = vmatprep.subr.mxu0 %v458
    %691 = vmatpush1.msra.mxu0 %v457
    %692 = vmatprep.subr.mxu0 %v454
    %693 = vmatpush1.msra.mxu0 %v453
    %694 = vmatprep.subr.mxu0 %v450
    %695 = vmatpush1.msra.mxu0 %v449
    %696 = vmatprep.subr.mxu0 %v446
    %697 = vmatpush1.msra.mxu0 %v445
    %698 = vmatprep.subr.mxu0 %v442
    %699 = vmatpush1.msra.mxu0 %v441
    %700 = vmatprep.subr.mxu0 %v438
    %701 = vmatpush1.msra.mxu0 %v437
    %702 = vmatprep.subr.mxu0 %v434
    %703 = vmatpush1.msra.mxu0 %v433
    %704 = vmatprep.subr.mxu0 %v430
    %705 = vmatpush1.msra.mxu0 %v429
    %706 = vmatprep.subr.mxu0 %v426
    %707 = vmatpush1.msra.mxu0 %v425
    %708 = vmatprep.subr.mxu0 0.0
    %709 = vmatpush2.msra.mxu0 0.0
    %710 = vmatprep.subr.mxu0 0.0
    %711 = vmatpush2.msra.mxu0 0.0
    %712 = vmatprep.subr.mxu0 0.0
    %713 = vmatpush2.msra.mxu0 0.0
    %714 = vmatprep.subr.mxu0 0.0
    %715 = vmatpush2.msra.mxu0 0.0
    %716 = vmatprep.subr.mxu0 0.0
    %717 = vmatpush2.msra.mxu0 0.0
    %718 = vmatprep.subr.mxu0 0.0
    %719 = vmatpush2.msra.mxu0 0.0
    %720 = vmatprep.subr.mxu0 0.0
    %721 = vmatpush2.msra.mxu0 0.0
    %722 = vmatprep.subr.mxu0 0.0
    %723 = vmatpush2.msra.mxu0 0.0
    %724 = vmatprep.subr.mxu0 0.0
    %725 = vmatpush2.msra.mxu0 0.0
    %726 = vmatprep.subr.mxu0 0.0
    %727 = vmatpush2.msra.mxu0 0.0
    %728 = vmatprep.subr.mxu0 0.0
    %729 = vmatpush2.msra.mxu0 0.0
    %730 = vmatprep.subr.mxu0 0.0
    %731 = vmatpush2.msra.mxu0 0.0
    %732 = vmatprep.subr.mxu0 0.0
    %733 = vmatpush2.msra.mxu0 0.0
    %734 = vmatprep.subr.mxu0 0.0
    %735 = vmatpush2.msra.mxu0 0.0
    %736 = vmatprep.subr.mxu0 0.0
    %737 = vmatpush2.msra.mxu0 0.0
    %738 = vmatprep.subr.mxu0 0.0
    %739 = vmatpush2.msra.mxu0 0.0
    %740 = vmatprep.mubr.f32.mxu0 0.0
    %741 = vmatmul.mubr.f32.gmra.mxu0 %v669
    %v742 = vpop.f32.mrf.mxu0
    %v743 = vadd.f32 0.0, %v742
    %v744 = vpop.f32.mrf.mxu0
    %v745 = vadd.f32 0.0, %v744
    %746 = vdwg.mxu0
    %747 = vmatprep.subr.mxu0 %v488
    %748 = vmatpush1.msra.mxu0 %v487
    %749 = vmatprep.subr.mxu0 %v484
    %750 = vmatpush1.msra.mxu0 %v483
    %751 = vmatprep.subr.mxu0 %v480
    %752 = vmatpush1.msra.mxu0 %v479
    %753 = vmatprep.subr.mxu0 %v476
    %754 = vmatpush1.msra.mxu0 %v475
    %755 = vmatprep.subr.mxu0 %v472
    %756 = vmatpush1.msra.mxu0 %v471
    %757 = vmatprep.subr.mxu0 %v468
    %758 = vmatpush1.msra.mxu0 %v467
    %759 = vmatprep.subr.mxu0 %v464
    %760 = vmatpush1.msra.mxu0 %v463
    %761 = vmatprep.subr.mxu0 %v460
    %762 = vmatpush1.msra.mxu0 %v459
    %763 = vmatprep.subr.mxu0 %v456
    %764 = vmatpush1.msra.mxu0 %v455
    %765 = vmatprep.subr.mxu0 %v452
    %766 = vmatpush1.msra.mxu0 %v451
    %767 = vmatprep.subr.mxu0 %v448
    %768 = vmatpush1.msra.mxu0 %v447
    %769 = vmatprep.subr.mxu0 %v444
    %770 = vmatpush1.msra.mxu0 %v443
    %771 = vmatprep.subr.mxu0 %v440
    %772 = vmatpush1.msra.mxu0 %v439
    %773 = vmatprep.subr.mxu0 %v436
    %774 = vmatpush1.msra.mxu0 %v435
    %775 = vmatprep.subr.mxu0 %v432
    %776 = vmatpush1.msra.mxu0 %v431
    %777 = vmatprep.subr.mxu0 %v428
    %778 = vmatpush1.msra.mxu0 %v427
    %779 = vmatprep.subr.mxu0 0.0
    %780 = vmatpush2.msra.mxu0 0.0
    %781 = vmatprep.subr.mxu0 0.0
    %782 = vmatpush2.msra.mxu0 0.0
    %783 = vmatprep.subr.mxu0 0.0
    %784 = vmatpush2.msra.mxu0 0.0
    %785 = vmatprep.subr.mxu0 0.0
    %786 = vmatpush2.msra.mxu0 0.0
    %787 = vmatprep.subr.mxu0 0.0
    %788 = vmatpush2.msra.mxu0 0.0
    %789 = vmatprep.subr.mxu0 0.0
    %790 = vmatpush2.msra.mxu0 0.0
    %791 = vmatprep.subr.mxu0 0.0
    %792 = vmatpush2.msra.mxu0 0.0
    %793 = vmatprep.subr.mxu0 0.0
    %794 = vmatpush2.msra.mxu0 0.0
    %795 = vmatprep.subr.mxu0 0.0
    %796 = vmatpush2.msra.mxu0 0.0
    %797 = vmatprep.subr.mxu0 0.0
    %798 = vmatpush2.msra.mxu0 0.0
    %799 = vmatprep.subr.mxu0 0.0
    %800 = vmatpush2.msra.mxu0 0.0
    %801 = vmatprep.subr.mxu0 0.0
    %802 = vmatpush2.msra.mxu0 0.0
    %803 = vmatprep.subr.mxu0 0.0
    %804 = vmatpush2.msra.mxu0 0.0
    %805 = vmatprep.subr.mxu0 0.0
    %806 = vmatpush2.msra.mxu0 0.0
    %807 = vmatprep.subr.mxu0 0.0
    %808 = vmatpush2.msra.mxu0 0.0
    %809 = vmatprep.subr.mxu0 0.0
    %810 = vmatpush2.msra.mxu0 0.0
    %811 = vmatprep.mubr.f32.mxu0 0.0
    %812 = vmatmul.mubr.f32.gmra.mxu0 %v669
    %v813 = vpop.f32.mrf.mxu0
    %v814 = vadd.f32 0.0, %v813
    %v815 = vpop.f32.mrf.mxu0
    %v816 = vadd.f32 0.0, %v815
    %817 = vdwg.mxu0
    %v818 = vadd.f32 %v672, %v743
    %v819 = vadd.f32 %v673, %v745
    %v820 = vadd.f32 %v674, %v814
    %v821 = vadd.f32 %v675, %v816
    %v822 = vmul.f32 %v818, 0.5
    %v823 = vtanh.pop %v822
    %v824 = vadd.f32 %v823, 1.0
    %v825 = vmul.f32 %v824, 0.5
    %v826 = vmul.f32 %v819, 0.5
    %v827 = vtanh.pop %v826
    %v828 = vadd.f32 %v827, 1.0
    %v829 = vmul.f32 %v828, 0.5
    %v830 = vtanh.pop %v820
    %v831 = vmul.f32 %v821, 0.5
    %v832 = vtanh.pop %v831
    %v833 = vadd.f32 %v832, 1.0
    %v834 = vmul.f32 %v833, 0.5
    %v835 = vmul.f32 %v829, %v670
    %v836 = vmul.f32 %v825, %v830
    %v837 = vadd.f32 %v835, %v836
    %v838 = vtanh.pop %v837
    %v839 = vmul.f32 %v834, %v838
    %s840 = sadd.s32 %s489, 1
    %v841 = vstv %s840
    %vm842 = vcmp.gt.s32.totalorder %v424, %v841
    %v843 = vsel %vm842, 1, 0
    %844 = vset.pattern.permute.xlu0 0
    %845 = vperm.xlu0 %844, %v843
    %v846 = vpop.permute.xlu0 %845
    %vm847 = vcmp.eq.s32.totalorder %v846, 1
    %v848 = vsel %vm847, %v839, 0.0
    %s849 = scalar_lea.vmem [#allocation11], 8
    %850 = vst [vmem:[%s849] sm:$0xff] %v848
    %v851 = vsel %vm847, %v839, %v669
    %v852 = vsel %vm847, %v837, %v670
    %s853 = scalar_lea.vmem [#allocation2], 64
    %v854 = vld [vmem:[%s853] sm:$0xff]
    %v855 = vld [vmem:[%s853 + $0x8] sm:$0xff]
    %v856 = vld [vmem:[%s853 + $0x10] sm:$0xff]
    %v857 = vld [vmem:[%s853 + $0x18] sm:$0xff]
    %858 = vmatprep.subr.mxu0 %v486
    %859 = vmatpush1.msra.mxu0 %v485
    %860 = vmatprep.subr.mxu0 %v482
    %861 = vmatpush1.msra.mxu0 %v481
    %862 = vmatprep.subr.mxu0 %v478
    %863 = vmatpush1.msra.mxu0 %v477
    %864 = vmatprep.subr.mxu0 %v474
    %865 = vmatpush1.msra.mxu0 %v473
    %866 = vmatprep.subr.mxu0 %v470
    %867 = vmatpush1.msra.mxu0 %v469
    %868 = vmatprep.subr.mxu0 %v466
    %869 = vmatpush1.msra.mxu0 %v465
    %870 = vmatprep.subr.mxu0 %v462
    %871 = vmatpush1.msra.mxu0 %v461
    %872 = vmatprep.subr.mxu0 %v458
    %873 = vmatpush1.msra.mxu0 %v457
    %874 = vmatprep.subr.mxu0 %v454
    %875 = vmatpush1.msra.mxu0 %v453
    %876 = vmatprep.subr.mxu0 %v450
    %877 = vmatpush1.msra.mxu0 %v449
    %878 = vmatprep.subr.mxu0 %v446
    %879 = vmatpush1.msra.mxu0 %v445
    %880 = vmatprep.subr.mxu0 %v442
    %881 = vmatpush1.msra.mxu0 %v441
    %882 = vmatprep.subr.mxu0 %v438
    %883 = vmatpush1.msra.mxu0 %v437
    %884 = vmatprep.subr.mxu0 %v434
    %885 = vmatpush1.msra.mxu0 %v433
    %886 = vmatprep.subr.mxu0 %v430
    %887 = vmatpush1.msra.mxu0 %v429
    %888 = vmatprep.subr.mxu0 %v426
    %889 = vmatpush1.msra.mxu0 %v425
    %890 = vmatprep.subr.mxu0 0.0
    %891 = vmatpush2.msra.mxu0 0.0
    %892 = vmatprep.subr.mxu0 0.0
    %893 = vmatpush2.msra.mxu0 0.0
    %894 = vmatprep.subr.mxu0 0.0
    %895 = vmatpush2.msra.mxu0 0.0
    %896 = vmatprep.subr.mxu0 0.0
    %897 = vmatpush2.msra.mxu0 0.0
    %898 = vmatprep.subr.mxu0 0.0
    %899 = vmatpush2.msra.mxu0 0.0
    %900 = vmatprep.subr.mxu0 0.0
    %901 = vmatpush2.msra.mxu0 0.0
    %902 = vmatprep.subr.mxu0 0.0
    %903 = vmatpush2.msra.mxu0 0.0
    %904 = vmatprep.subr.mxu0 0.0
    %905 = vmatpush2.msra.mxu0 0.0
    %906 = vmatprep.subr.mxu0 0.0
    %907 = vmatpush2.msra.mxu0 0.0
    %908 = vmatprep.subr.mxu0 0.0
    %909 = vmatpush2.msra.mxu0 0.0
    %910 = vmatprep.subr.mxu0 0.0
    %911 = vmatpush2.msra.mxu0 0.0
    %912 = vmatprep.subr.mxu0 0.0
    %913 = vmatpush2.msra.mxu0 0.0
    %914 = vmatprep.subr.mxu0 0.0
    %915 = vmatpush2.msra.mxu0 0.0
    %916 = vmatprep.subr.mxu0 0.0
    %917 = vmatpush2.msra.mxu0 0.0
    %918 = vmatprep.subr.mxu0 0.0
    %919 = vmatpush2.msra.mxu0 0.0
    %920 = vmatprep.subr.mxu0 0.0
    %921 = vmatpush2.msra.mxu0 0.0
    %922 = vmatprep.mubr.f32.mxu0 0.0
    %923 = vmatmul.mubr.f32.gmra.mxu0 %v851
    %v924 = vpop.f32.mrf.mxu0
    %v925 = vadd.f32 0.0, %v924
    %v926 = vpop.f32.mrf.mxu0
    %v927 = vadd.f32 0.0, %v926
    %928 = vdwg.mxu0
    %929 = vmatprep.subr.mxu0 %v488
    %930 = vmatpush1.msra.mxu0 %v487
    %931 = vmatprep.subr.mxu0 %v484
    %932 = vmatpush1.msra.mxu0 %v483
    %933 = vmatprep.subr.mxu0 %v480
    %934 = vmatpush1.msra.mxu0 %v479
    %935 = vmatprep.subr.mxu0 %v476
    %936 = vmatpush1.msra.mxu0 %v475
    %937 = vmatprep.subr.mxu0 %v472
    %938 = vmatpush1.msra.mxu0 %v471
    %939 = vmatprep.subr.mxu0 %v468
    %940 = vmatpush1.msra.mxu0 %v467
    %941 = vmatprep.subr.mxu0 %v464
    %942 = vmatpush1.msra.mxu0 %v463
    %943 = vmatprep.subr.mxu0 %v460
    %944 = vmatpush1.msra.mxu0 %v459
    %945 = vmatprep.subr.mxu0 %v456
    %946 = vmatpush1.msra.mxu0 %v455
    %947 = vmatprep.subr.mxu0 %v452
    %948 = vmatpush1.msra.mxu0 %v451
    %949 = vmatprep.subr.mxu0 %v448
    %950 = vmatpush1.msra.mxu0 %v447
    %951 = vmatprep.subr.mxu0 %v444
    %952 = vmatpush1.msra.mxu0 %v443
    %953 = vmatprep.subr.mxu0 %v440
    %954 = vmatpush1.msra.mxu0 %v439
    %955 = vmatprep.subr.mxu0 %v436
    %956 = vmatpush1.msra.mxu0 %v435
    %957 = vmatprep.subr.mxu0 %v432
    %958 = vmatpush1.msra.mxu0 %v431
    %959 = vmatprep.subr.mxu0 %v428
    %960 = vmatpush1.msra.mxu0 %v427
    %961 = vmatprep.subr.mxu0 0.0
    %962 = vmatpush2.msra.mxu0 0.0
    %963 = vmatprep.subr.mxu0 0.0
    %964 = vmatpush2.msra.mxu0 0.0
    %965 = vmatprep.subr.mxu0 0.0
    %966 = vmatpush2.msra.mxu0 0.0
    %967 = vmatprep.subr.mxu0 0.0
    %968 = vmatpush2.msra.mxu0 0.0
    %969 = vmatprep.subr.mxu0 0.0
    %970 = vmatpush2.msra.mxu0 0.0
    %971 = vmatprep.subr.mxu0 0.0
    %972 = vmatpush2.msra.mxu0 0.0
    %973 = vmatprep.subr.mxu0 0.0
    %974 = vmatpush2.msra.mxu0 0.0
    %975 = vmatprep.subr.mxu0 0.0
    %976 = vmatpush2.msra.mxu0 0.0
    %977 = vmatprep.subr.mxu0 0.0
    %978 = vmatpush2.msra.mxu0 0.0
    %979 = vmatprep.subr.mxu0 0.0
    %980 = vmatpush2.msra.mxu0 0.0
    %981 = vmatprep.subr.mxu0 0.0
    %982 = vmatpush2.msra.mxu0 0.0
    %983 = vmatprep.subr.mxu0 0.0
    %984 = vmatpush2.msra.mxu0 0.0
    %985 = vmatprep.subr.mxu0 0.0
    %986 = vmatpush2.msra.mxu0 0.0
    %987 = vmatprep.subr.mxu0 0.0
    %988 = vmatpush2.msra.mxu0 0.0
    %989 = vmatprep.subr.mxu0 0.0
    %990 = vmatpush2.msra.mxu0 0.0
    %991 = vmatprep.subr.mxu0 0.0
    %992 = vmatpush2.msra.mxu0 0.0
    %993 = vmatprep.mubr.f32.mxu0 0.0
    %994 = vmatmul.mubr.f32.gmra.mxu0 %v851
    %v995 = vpop.f32.mrf.mxu0
    %v996 = vadd.f32 0.0, %v995
    %v997 = vpop.f32.mrf.mxu0
    %v998 = vadd.f32 0.0, %v997
    %999 = vdwg.mxu0
    %v1000 = vadd.f32 %v854, %v925
    %v1001 = vadd.f32 %v855, %v927
    %v1002 = vadd.f32 %v856, %v996
    %v1003 = vadd.f32 %v857, %v998
    %v1004 = vmul.f32 %v1000, 0.5
    %v1005 = vtanh.pop %v1004
    %v1006 = vadd.f32 %v1005, 1.0
    %v1007 = vmul.f32 %v1006, 0.5
    %v1008 = vmul.f32 %v1001, 0.5
    %v1009 = vtanh.pop %v1008
    %v1010 = vadd.f32 %v1009, 1.0
    %v1011 = vmul.f32 %v1010, 0.5
    %v1012 = vtanh.pop %v1002
    %v1013 = vmul.f32 %v1003, 0.5
    %v1014 = vtanh.pop %v1013
    %v1015 = vadd.f32 %v1014, 1.0
    %v1016 = vmul.f32 %v1015, 0.5
    %v1017 = vmul.f32 %v1011, %v852
    %v1018 = vmul.f32 %v1007, %v1012
    %v1019 = vadd.f32 %v1017, %v1018
    %v1020 = vtanh.pop %v1019
    %v1021 = vmul.f32 %v1016, %v1020
    %s1022 = sadd.s32 %s489, 2
    %v1023 = vstv %s1022
    %vm1024 = vcmp.gt.s32.totalorder %v424, %v1023
    %v1025 = vsel %vm1024, 1, 0
    %1026 = vset.pattern.permute.xlu0 0
    %1027 = vperm.xlu0 %1026, %v1025
    %v1028 = vpop.permute.xlu0 %1027
    %vm1029 = vcmp.eq.s32.totalorder %v1028, 1
    %v1030 = vsel %vm1029, %v1021, 0.0
    %s1031 = scalar_lea.vmem [#allocation11], 16
    %1032 = vst [vmem:[%s1031] sm:$0xff] %v1030
    %v1033 = vsel %vm1029, %v1021, %v851
    %v1034 = vsel %vm1029, %v1019, %v852
    %s1035 = scalar_lea.vmem [#allocation2], 96
    %v1036 = vld [vmem:[%s1035] sm:$0xff]
    %v1037 = vld [vmem:[%s1035 + $0x8] sm:$0xff]
    %v1038 = vld [vmem:[%s1035 + $0x10] sm:$0xff]
    %v1039 = vld [vmem:[%s1035 + $0x18] sm:$0xff]
    %1040 = vmatprep.subr.mxu0 %v486
    %1041 = vmatpush1.msra.mxu0 %v485
    %1042 = vmatprep.subr.mxu0 %v482
    %1043 = vmatpush1.msra.mxu0 %v481
    %1044 = vmatprep.subr.mxu0 %v478
    %1045 = vmatpush1.msra.mxu0 %v477
    %1046 = vmatprep.subr.mxu0 %v474
    %1047 = vmatpush1.msra.mxu0 %v473
    %1048 = vmatprep.subr.mxu0 %v470
    %1049 = vmatpush1.msra.mxu0 %v469
    %1050 = vmatprep.subr.mxu0 %v466
    %1051 = vmatpush1.msra.mxu0 %v465
    %1052 = vmatprep.subr.mxu0 %v462
    %1053 = vmatpush1.msra.mxu0 %v461
    %1054 = vmatprep.subr.mxu0 %v458
    %1055 = vmatpush1.msra.mxu0 %v457
    %1056 = vmatprep.subr.mxu0 %v454
    %1057 = vmatpush1.msra.mxu0 %v453
    %1058 = vmatprep.subr.mxu0 %v450
    %1059 = vmatpush1.msra.mxu0 %v449
    %1060 = vmatprep.subr.mxu0 %v446
    %1061 = vmatpush1.msra.mxu0 %v445
    %1062 = vmatprep.subr.mxu0 %v442
    %1063 = vmatpush1.msra.mxu0 %v441
    %1064 = vmatprep.subr.mxu0 %v438
    %1065 = vmatpush1.msra.mxu0 %v437
    %1066 = vmatprep.subr.mxu0 %v434
    %1067 = vmatpush1.msra.mxu0 %v433
    %1068 = vmatprep.subr.mxu0 %v430
    %1069 = vmatpush1.msra.mxu0 %v429
    %1070 = vmatprep.subr.mxu0 %v426
    %1071 = vmatpush1.msra.mxu0 %v425
    %1072 = vmatprep.subr.mxu0 0.0
    %1073 = vmatpush2.msra.mxu0 0.0
    %1074 = vmatprep.subr.mxu0 0.0
    %1075 = vmatpush2.msra.mxu0 0.0
    %1076 = vmatprep.subr.mxu0 0.0
    %1077 = vmatpush2.msra.mxu0 0.0
    %1078 = vmatprep.subr.mxu0 0.0
    %1079 = vmatpush2.msra.mxu0 0.0
    %1080 = vmatprep.subr.mxu0 0.0
    %1081 = vmatpush2.msra.mxu0 0.0
    %1082 = vmatprep.subr.mxu0 0.0
    %1083 = vmatpush2.msra.mxu0 0.0
    %1084 = vmatprep.subr.mxu0 0.0
    %1085 = vmatpush2.msra.mxu0 0.0
    %1086 = vmatprep.subr.mxu0 0.0
    %1087 = vmatpush2.msra.mxu0 0.0
    %1088 = vmatprep.subr.mxu0 0.0
    %1089 = vmatpush2.msra.mxu0 0.0
    %1090 = vmatprep.subr.mxu0 0.0
    %1091 = vmatpush2.msra.mxu0 0.0
    %1092 = vmatprep.subr.mxu0 0.0
    %1093 = vmatpush2.msra.mxu0 0.0
    %1094 = vmatprep.subr.mxu0 0.0
    %1095 = vmatpush2.msra.mxu0 0.0
    %1096 = vmatprep.subr.mxu0 0.0
    %1097 = vmatpush2.msra.mxu0 0.0
    %1098 = vmatprep.subr.mxu0 0.0
    %1099 = vmatpush2.msra.mxu0 0.0
    %1100 = vmatprep.subr.mxu0 0.0
    %1101 = vmatpush2.msra.mxu0 0.0
    %1102 = vmatprep.subr.mxu0 0.0
    %1103 = vmatpush2.msra.mxu0 0.0
    %1104 = vmatprep.mubr.f32.mxu0 0.0
    %1105 = vmatmul.mubr.f32.gmra.mxu0 %v1033
    %v1106 = vpop.f32.mrf.mxu0
    %v1107 = vadd.f32 0.0, %v1106
    %v1108 = vpop.f32.mrf.mxu0
    %v1109 = vadd.f32 0.0, %v1108
    %1110 = vdwg.mxu0
    %1111 = vmatprep.subr.mxu0 %v488
    %1112 = vmatpush1.msra.mxu0 %v487
    %1113 = vmatprep.subr.mxu0 %v484
    %1114 = vmatpush1.msra.mxu0 %v483
    %1115 = vmatprep.subr.mxu0 %v480
    %1116 = vmatpush1.msra.mxu0 %v479
    %1117 = vmatprep.subr.mxu0 %v476
    %1118 = vmatpush1.msra.mxu0 %v475
    %1119 = vmatprep.subr.mxu0 %v472
    %1120 = vmatpush1.msra.mxu0 %v471
    %1121 = vmatprep.subr.mxu0 %v468
    %1122 = vmatpush1.msra.mxu0 %v467
    %1123 = vmatprep.subr.mxu0 %v464
    %1124 = vmatpush1.msra.mxu0 %v463
    %1125 = vmatprep.subr.mxu0 %v460
    %1126 = vmatpush1.msra.mxu0 %v459
    %1127 = vmatprep.subr.mxu0 %v456
    %1128 = vmatpush1.msra.mxu0 %v455
    %1129 = vmatprep.subr.mxu0 %v452
    %1130 = vmatpush1.msra.mxu0 %v451
    %1131 = vmatprep.subr.mxu0 %v448
    %1132 = vmatpush1.msra.mxu0 %v447
    %1133 = vmatprep.subr.mxu0 %v444
    %1134 = vmatpush1.msra.mxu0 %v443
    %1135 = vmatprep.subr.mxu0 %v440
    %1136 = vmatpush1.msra.mxu0 %v439
    %1137 = vmatprep.subr.mxu0 %v436
    %1138 = vmatpush1.msra.mxu0 %v435
    %1139 = vmatprep.subr.mxu0 %v432
    %1140 = vmatpush1.msra.mxu0 %v431
    %1141 = vmatprep.subr.mxu0 %v428
    %1142 = vmatpush1.msra.mxu0 %v427
    %1143 = vmatprep.subr.mxu0 0.0
    %1144 = vmatpush2.msra.mxu0 0.0
    %1145 = vmatprep.subr.mxu0 0.0
    %1146 = vmatpush2.msra.mxu0 0.0
    %1147 = vmatprep.subr.mxu0 0.0
    %1148 = vmatpush2.msra.mxu0 0.0
    %1149 = vmatprep.subr.mxu0 0.0
    %1150 = vmatpush2.msra.mxu0 0.0
    %1151 = vmatprep.subr.mxu0 0.0
    %1152 = vmatpush2.msra.mxu0 0.0
    %1153 = vmatprep.subr.mxu0 0.0
    %1154 = vmatpush2.msra.mxu0 0.0
    %1155 = vmatprep.subr.mxu0 0.0
    %1156 = vmatpush2.msra.mxu0 0.0
    %1157 = vmatprep.subr.mxu0 0.0
    %1158 = vmatpush2.msra.mxu0 0.0
    %1159 = vmatprep.subr.mxu0 0.0
    %1160 = vmatpush2.msra.mxu0 0.0
    %1161 = vmatprep.subr.mxu0 0.0
    %1162 = vmatpush2.msra.mxu0 0.0
    %1163 = vmatprep.subr.mxu0 0.0
    %1164 = vmatpush2.msra.mxu0 0.0
    %1165 = vmatprep.subr.mxu0 0.0
    %1166 = vmatpush2.msra.mxu0 0.0
    %1167 = vmatprep.subr.mxu0 0.0
    %1168 = vmatpush2.msra.mxu0 0.0
    %1169 = vmatprep.subr.mxu0 0.0
    %1170 = vmatpush2.msra.mxu0 0.0
    %1171 = vmatprep.subr.mxu0 0.0
    %1172 = vmatpush2.msra.mxu0 0.0
    %1173 = vmatprep.subr.mxu0 0.0
    %1174 = vmatpush2.msra.mxu0 0.0
    %1175 = vmatprep.mubr.f32.mxu0 0.0
    %1176 = vmatmul.mubr.f32.gmra.mxu0 %v1033
    %v1177 = vpop.f32.mrf.mxu0
    %v1178 = vadd.f32 0.0, %v1177
    %v1179 = vpop.f32.mrf.mxu0
    %v1180 = vadd.f32 0.0, %v1179
    %1181 = vdwg.mxu0
    %v1182 = vadd.f32 %v1036, %v1107
    %v1183 = vadd.f32 %v1037, %v1109
    %v1184 = vadd.f32 %v1038, %v1178
    %v1185 = vadd.f32 %v1039, %v1180
    %v1186 = vmul.f32 %v1182, 0.5
    %v1187 = vtanh.pop %v1186
    %v1188 = vadd.f32 %v1187, 1.0
    %v1189 = vmul.f32 %v1188, 0.5
    %v1190 = vmul.f32 %v1183, 0.5
    %v1191 = vtanh.pop %v1190
    %v1192 = vadd.f32 %v1191, 1.0
    %v1193 = vmul.f32 %v1192, 0.5
    %v1194 = vtanh.pop %v1184
    %v1195 = vmul.f32 %v1185, 0.5
    %v1196 = vtanh.pop %v1195
    %v1197 = vadd.f32 %v1196, 1.0
    %v1198 = vmul.f32 %v1197, 0.5
    %v1199 = vmul.f32 %v1193, %v1034
    %v1200 = vmul.f32 %v1189, %v1194
    %v1201 = vadd.f32 %v1199, %v1200
    %v1202 = vtanh.pop %v1201
    %v1203 = vmul.f32 %v1198, %v1202
    %s1204 = sadd.s32 %s489, 3
    %v1205 = vstv %s1204
    %vm1206 = vcmp.gt.s32.totalorder %v424, %v1205
    %v1207 = vsel %vm1206, 1, 0
    %1208 = vset.pattern.permute.xlu0 0
    %1209 = vperm.xlu0 %1208, %v1207
    %v1210 = vpop.permute.xlu0 %1209
    %vm1211 = vcmp.eq.s32.totalorder %v1210, 1
    %v1212 = vsel %vm1211, %v1203, 0.0
    %s1213 = scalar_lea.vmem [#allocation11], 24
    %1214 = vst [vmem:[%s1213] sm:$0xff] %v1212
    %v1215 = vsel %vm1211, %v1203, %v1033
    %v1216 = vsel %vm1211, %v1201, %v1034
    %s1217 = scalar_lea.vmem [#allocation2], 128
    %v1218 = vld [vmem:[%s1217] sm:$0xff]
    %v1219 = vld [vmem:[%s1217 + $0x8] sm:$0xff]
    %v1220 = vld [vmem:[%s1217 + $0x10] sm:$0xff]
    %v1221 = vld [vmem:[%s1217 + $0x18] sm:$0xff]
    %1222 = vmatprep.subr.mxu0 %v486
    %1223 = vmatpush1.msra.mxu0 %v485
    %1224 = vmatprep.subr.mxu0 %v482
    %1225 = vmatpush1.msra.mxu0 %v481
    %1226 = vmatprep.subr.mxu0 %v478
    %1227 = vmatpush1.msra.mxu0 %v477
    %1228 = vmatprep.subr.mxu0 %v474
    %1229 = vmatpush1.msra.mxu0 %v473
    %1230 = vmatprep.subr.mxu0 %v470
    %1231 = vmatpush1.msra.mxu0 %v469
    %1232 = vmatprep.subr.mxu0 %v466
    %1233 = vmatpush1.msra.mxu0 %v465
    %1234 = vmatprep.subr.mxu0 %v462
    %1235 = vmatpush1.msra.mxu0 %v461
    %1236 = vmatprep.subr.mxu0 %v458
    %1237 = vmatpush1.msra.mxu0 %v457
    %1238 = vmatprep.subr.mxu0 %v454
    %1239 = vmatpush1.msra.mxu0 %v453
    %1240 = vmatprep.subr.mxu0 %v450
    %1241 = vmatpush1.msra.mxu0 %v449
    %1242 = vmatprep.subr.mxu0 %v446
    %1243 = vmatpush1.msra.mxu0 %v445
    %1244 = vmatprep.subr.mxu0 %v442
    %1245 = vmatpush1.msra.mxu0 %v441
    %1246 = vmatprep.subr.mxu0 %v438
    %1247 = vmatpush1.msra.mxu0 %v437
    %1248 = vmatprep.subr.mxu0 %v434
    %1249 = vmatpush1.msra.mxu0 %v433
    %1250 = vmatprep.subr.mxu0 %v430
    %1251 = vmatpush1.msra.mxu0 %v429
    %1252 = vmatprep.subr.mxu0 %v426
    %1253 = vmatpush1.msra.mxu0 %v425
    %1254 = vmatprep.subr.mxu0 0.0
    %1255 = vmatpush2.msra.mxu0 0.0
    %1256 = vmatprep.subr.mxu0 0.0
    %1257 = vmatpush2.msra.mxu0 0.0
    %1258 = vmatprep.subr.mxu0 0.0
    %1259 = vmatpush2.msra.mxu0 0.0
    %1260 = vmatprep.subr.mxu0 0.0
    %1261 = vmatpush2.msra.mxu0 0.0
    %1262 = vmatprep.subr.mxu0 0.0
    %1263 = vmatpush2.msra.mxu0 0.0
    %1264 = vmatprep.subr.mxu0 0.0
    %1265 = vmatpush2.msra.mxu0 0.0
    %1266 = vmatprep.subr.mxu0 0.0
    %1267 = vmatpush2.msra.mxu0 0.0
    %1268 = vmatprep.subr.mxu0 0.0
    %1269 = vmatpush2.msra.mxu0 0.0
    %1270 = vmatprep.subr.mxu0 0.0
    %1271 = vmatpush2.msra.mxu0 0.0
    %1272 = vmatprep.subr.mxu0 0.0
    %1273 = vmatpush2.msra.mxu0 0.0
    %1274 = vmatprep.subr.mxu0 0.0
    %1275 = vmatpush2.msra.mxu0 0.0
    %1276 = vmatprep.subr.mxu0 0.0
    %1277 = vmatpush2.msra.mxu0 0.0
    %1278 = vmatprep.subr.mxu0 0.0
    %1279 = vmatpush2.msra.mxu0 0.0
    %1280 = vmatprep.subr.mxu0 0.0
    %1281 = vmatpush2.msra.mxu0 0.0
    %1282 = vmatprep.subr.mxu0 0.0
    %1283 = vmatpush2.msra.mxu0 0.0
    %1284 = vmatprep.subr.mxu0 0.0
    %1285 = vmatpush2.msra.mxu0 0.0
    %1286 = vmatprep.mubr.f32.mxu0 0.0
    %1287 = vmatmul.mubr.f32.gmra.mxu0 %v1215
    %v1288 = vpop.f32.mrf.mxu0
    %v1289 = vadd.f32 0.0, %v1288
    %v1290 = vpop.f32.mrf.mxu0
    %v1291 = vadd.f32 0.0, %v1290
    %1292 = vdwg.mxu0
    %1293 = vmatprep.subr.mxu0 %v488
    %1294 = vmatpush1.msra.mxu0 %v487
    %1295 = vmatprep.subr.mxu0 %v484
    %1296 = vmatpush1.msra.mxu0 %v483
    %1297 = vmatprep.subr.mxu0 %v480
    %1298 = vmatpush1.msra.mxu0 %v479
    %1299 = vmatprep.subr.mxu0 %v476
    %1300 = vmatpush1.msra.mxu0 %v475
    %1301 = vmatprep.subr.mxu0 %v472
    %1302 = vmatpush1.msra.mxu0 %v471
    %1303 = vmatprep.subr.mxu0 %v468
    %1304 = vmatpush1.msra.mxu0 %v467
    %1305 = vmatprep.subr.mxu0 %v464
    %1306 = vmatpush1.msra.mxu0 %v463
    %1307 = vmatprep.subr.mxu0 %v460
    %1308 = vmatpush1.msra.mxu0 %v459
    %1309 = vmatprep.subr.mxu0 %v456
    %1310 = vmatpush1.msra.mxu0 %v455
    %1311 = vmatprep.subr.mxu0 %v452
    %1312 = vmatpush1.msra.mxu0 %v451
    %1313 = vmatprep.subr.mxu0 %v448
    %1314 = vmatpush1.msra.mxu0 %v447
    %1315 = vmatprep.subr.mxu0 %v444
    %1316 = vmatpush1.msra.mxu0 %v443
    %1317 = vmatprep.subr.mxu0 %v440
    %1318 = vmatpush1.msra.mxu0 %v439
    %1319 = vmatprep.subr.mxu0 %v436
    %1320 = vmatpush1.msra.mxu0 %v435
    %1321 = vmatprep.subr.mxu0 %v432
    %1322 = vmatpush1.msra.mxu0 %v431
    %1323 = vmatprep.subr.mxu0 %v428
    %1324 = vmatpush1.msra.mxu0 %v427
    %1325 = vmatprep.subr.mxu0 0.0
    %1326 = vmatpush2.msra.mxu0 0.0
    %1327 = vmatprep.subr.mxu0 0.0
    %1328 = vmatpush2.msra.mxu0 0.0
    %1329 = vmatprep.subr.mxu0 0.0
    %1330 = vmatpush2.msra.mxu0 0.0
    %1331 = vmatprep.subr.mxu0 0.0
    %1332 = vmatpush2.msra.mxu0 0.0
    %1333 = vmatprep.subr.mxu0 0.0
    %1334 = vmatpush2.msra.mxu0 0.0
    %1335 = vmatprep.subr.mxu0 0.0
    %1336 = vmatpush2.msra.mxu0 0.0
    %1337 = vmatprep.subr.mxu0 0.0
    %1338 = vmatpush2.msra.mxu0 0.0
    %1339 = vmatprep.subr.mxu0 0.0
    %1340 = vmatpush2.msra.mxu0 0.0
    %1341 = vmatprep.subr.mxu0 0.0
    %1342 = vmatpush2.msra.mxu0 0.0
    %1343 = vmatprep.subr.mxu0 0.0
    %1344 = vmatpush2.msra.mxu0 0.0
    %1345 = vmatprep.subr.mxu0 0.0
    %1346 = vmatpush2.msra.mxu0 0.0
    %1347 = vmatprep.subr.mxu0 0.0
    %1348 = vmatpush2.msra.mxu0 0.0
    %1349 = vmatprep.subr.mxu0 0.0
    %1350 = vmatpush2.msra.mxu0 0.0
    %1351 = vmatprep.subr.mxu0 0.0
    %1352 = vmatpush2.msra.mxu0 0.0
    %1353 = vmatprep.subr.mxu0 0.0
    %1354 = vmatpush2.msra.mxu0 0.0
    %1355 = vmatprep.subr.mxu0 0.0
    %1356 = vmatpush2.msra.mxu0 0.0
    %1357 = vmatprep.mubr.f32.mxu0 0.0
    %1358 = vmatmul.mubr.f32.gmra.mxu0 %v1215
    %v1359 = vpop.f32.mrf.mxu0
    %v1360 = vadd.f32 0.0, %v1359
    %v1361 = vpop.f32.mrf.mxu0
    %v1362 = vadd.f32 0.0, %v1361
    %1363 = vdwg.mxu0
    %v1364 = vadd.f32 %v1218, %v1289
    %v1365 = vadd.f32 %v1219, %v1291
    %v1366 = vadd.f32 %v1220, %v1360
    %v1367 = vadd.f32 %v1221, %v1362
    %v1368 = vmul.f32 %v1364, 0.5
    %v1369 = vtanh.pop %v1368
    %v1370 = vadd.f32 %v1369, 1.0
    %v1371 = vmul.f32 %v1370, 0.5
    %v1372 = vmul.f32 %v1365, 0.5
    %v1373 = vtanh.pop %v1372
    %v1374 = vadd.f32 %v1373, 1.0
    %v1375 = vmul.f32 %v1374, 0.5
    %v1376 = vtanh.pop %v1366
    %v1377 = vmul.f32 %v1367, 0.5
    %v1378 = vtanh.pop %v1377
    %v1379 = vadd.f32 %v1378, 1.0
    %v1380 = vmul.f32 %v1379, 0.5
    %v1381 = vmul.f32 %v1375, %v1216
    %v1382 = vmul.f32 %v1371, %v1376
    %v1383 = vadd.f32 %v1381, %v1382
    %v1384 = vtanh.pop %v1383
    %v1385 = vmul.f32 %v1380, %v1384
    %s1386 = sadd.s32 %s489, 4
    %v1387 = vstv %s1386
    %vm1388 = vcmp.gt.s32.totalorder %v424, %v1387
    %v1389 = vsel %vm1388, 1, 0
    %1390 = vset.pattern.permute.xlu0 0
    %1391 = vperm.xlu0 %1390, %v1389
    %v1392 = vpop.permute.xlu0 %1391
    %vm1393 = vcmp.eq.s32.totalorder %v1392, 1
    %v1394 = vsel %vm1393, %v1385, 0.0
    %s1395 = scalar_lea.vmem [#allocation11], 32
    %1396 = vst [vmem:[%s1395] sm:$0xff] %v1394
    %v1397 = vsel %vm1393, %v1385, %v1215
    %v1398 = vsel %vm1393, %v1383, %v1216
    %s1399 = scalar_lea.vmem [#allocation2], 160
    %v1400 = vld [vmem:[%s1399] sm:$0xff]
    %v1401 = vld [vmem:[%s1399 + $0x8] sm:$0xff]
    %v1402 = vld [vmem:[%s1399 + $0x10] sm:$0xff]
    %v1403 = vld [vmem:[%s1399 + $0x18] sm:$0xff]
    %1404 = vmatprep.subr.mxu0 %v486
    %1405 = vmatpush1.msra.mxu0 %v485
    %1406 = vmatprep.subr.mxu0 %v482
    %1407 = vmatpush1.msra.mxu0 %v481
    %1408 = vmatprep.subr.mxu0 %v478
    %1409 = vmatpush1.msra.mxu0 %v477
    %1410 = vmatprep.subr.mxu0 %v474
    %1411 = vmatpush1.msra.mxu0 %v473
    %1412 = vmatprep.subr.mxu0 %v470
    %1413 = vmatpush1.msra.mxu0 %v469
    %1414 = vmatprep.subr.mxu0 %v466
    %1415 = vmatpush1.msra.mxu0 %v465
    %1416 = vmatprep.subr.mxu0 %v462
    %1417 = vmatpush1.msra.mxu0 %v461
    %1418 = vmatprep.subr.mxu0 %v458
    %1419 = vmatpush1.msra.mxu0 %v457
    %1420 = vmatprep.subr.mxu0 %v454
    %1421 = vmatpush1.msra.mxu0 %v453
    %1422 = vmatprep.subr.mxu0 %v450
    %1423 = vmatpush1.msra.mxu0 %v449
    %1424 = vmatprep.subr.mxu0 %v446
    %1425 = vmatpush1.msra.mxu0 %v445
    %1426 = vmatprep.subr.mxu0 %v442
    %1427 = vmatpush1.msra.mxu0 %v441
    %1428 = vmatprep.subr.mxu0 %v438
    %1429 = vmatpush1.msra.mxu0 %v437
    %1430 = vmatprep.subr.mxu0 %v434
    %1431 = vmatpush1.msra.mxu0 %v433
    %1432 = vmatprep.subr.mxu0 %v430
    %1433 = vmatpush1.msra.mxu0 %v429
    %1434 = vmatprep.subr.mxu0 %v426
    %1435 = vmatpush1.msra.mxu0 %v425
    %1436 = vmatprep.subr.mxu0 0.0
    %1437 = vmatpush2.msra.mxu0 0.0
    %1438 = vmatprep.subr.mxu0 0.0
    %1439 = vmatpush2.msra.mxu0 0.0
    %1440 = vmatprep.subr.mxu0 0.0
    %1441 = vmatpush2.msra.mxu0 0.0
    %1442 = vmatprep.subr.mxu0 0.0
    %1443 = vmatpush2.msra.mxu0 0.0
    %1444 = vmatprep.subr.mxu0 0.0
    %1445 = vmatpush2.msra.mxu0 0.0
    %1446 = vmatprep.subr.mxu0 0.0
    %1447 = vmatpush2.msra.mxu0 0.0
    %1448 = vmatprep.subr.mxu0 0.0
    %1449 = vmatpush2.msra.mxu0 0.0
    %1450 = vmatprep.subr.mxu0 0.0
    %1451 = vmatpush2.msra.mxu0 0.0
    %1452 = vmatprep.subr.mxu0 0.0
    %1453 = vmatpush2.msra.mxu0 0.0
    %1454 = vmatprep.subr.mxu0 0.0
    %1455 = vmatpush2.msra.mxu0 0.0
    %1456 = vmatprep.subr.mxu0 0.0
    %1457 = vmatpush2.msra.mxu0 0.0
    %1458 = vmatprep.subr.mxu0 0.0
    %1459 = vmatpush2.msra.mxu0 0.0
    %1460 = vmatprep.subr.mxu0 0.0
    %1461 = vmatpush2.msra.mxu0 0.0
    %1462 = vmatprep.subr.mxu0 0.0
    %1463 = vmatpush2.msra.mxu0 0.0
    %1464 = vmatprep.subr.mxu0 0.0
    %1465 = vmatpush2.msra.mxu0 0.0
    %1466 = vmatprep.subr.mxu0 0.0
    %1467 = vmatpush2.msra.mxu0 0.0
    %1468 = vmatprep.mubr.f32.mxu0 0.0
    %1469 = vmatmul.mubr.f32.gmra.mxu0 %v1397
    %v1470 = vpop.f32.mrf.mxu0
    %v1471 = vadd.f32 0.0, %v1470
    %v1472 = vpop.f32.mrf.mxu0
    %v1473 = vadd.f32 0.0, %v1472
    %1474 = vdwg.mxu0
    %1475 = vmatprep.subr.mxu0 %v488
    %1476 = vmatpush1.msra.mxu0 %v487
    %1477 = vmatprep.subr.mxu0 %v484
    %1478 = vmatpush1.msra.mxu0 %v483
    %1479 = vmatprep.subr.mxu0 %v480
    %1480 = vmatpush1.msra.mxu0 %v479
    %1481 = vmatprep.subr.mxu0 %v476
    %1482 = vmatpush1.msra.mxu0 %v475
    %1483 = vmatprep.subr.mxu0 %v472
    %1484 = vmatpush1.msra.mxu0 %v471
    %1485 = vmatprep.subr.mxu0 %v468
    %1486 = vmatpush1.msra.mxu0 %v467
    %1487 = vmatprep.subr.mxu0 %v464
    %1488 = vmatpush1.msra.mxu0 %v463
    %1489 = vmatprep.subr.mxu0 %v460
    %1490 = vmatpush1.msra.mxu0 %v459
    %1491 = vmatprep.subr.mxu0 %v456
    %1492 = vmatpush1.msra.mxu0 %v455
    %1493 = vmatprep.subr.mxu0 %v452
    %1494 = vmatpush1.msra.mxu0 %v451
    %1495 = vmatprep.subr.mxu0 %v448
    %1496 = vmatpush1.msra.mxu0 %v447
    %1497 = vmatprep.subr.mxu0 %v444
    %1498 = vmatpush1.msra.mxu0 %v443
    %1499 = vmatprep.subr.mxu0 %v440
    %1500 = vmatpush1.msra.mxu0 %v439
    %1501 = vmatprep.subr.mxu0 %v436
    %1502 = vmatpush1.msra.mxu0 %v435
    %1503 = vmatprep.subr.mxu0 %v432
    %1504 = vmatpush1.msra.mxu0 %v431
    %1505 = vmatprep.subr.mxu0 %v428
    %1506 = vmatpush1.msra.mxu0 %v427
    %1507 = vmatprep.subr.mxu0 0.0
    %1508 = vmatpush2.msra.mxu0 0.0
    %1509 = vmatprep.subr.mxu0 0.0
    %1510 = vmatpush2.msra.mxu0 0.0
    %1511 = vmatprep.subr.mxu0 0.0
    %1512 = vmatpush2.msra.mxu0 0.0
    %1513 = vmatprep.subr.mxu0 0.0
    %1514 = vmatpush2.msra.mxu0 0.0
    %1515 = vmatprep.subr.mxu0 0.0
    %1516 = vmatpush2.msra.mxu0 0.0
    %1517 = vmatprep.subr.mxu0 0.0
    %1518 = vmatpush2.msra.mxu0 0.0
    %1519 = vmatprep.subr.mxu0 0.0
    %1520 = vmatpush2.msra.mxu0 0.0
    %1521 = vmatprep.subr.mxu0 0.0
    %1522 = vmatpush2.msra.mxu0 0.0
    %1523 = vmatprep.subr.mxu0 0.0
    %1524 = vmatpush2.msra.mxu0 0.0
    %1525 = vmatprep.subr.mxu0 0.0
    %1526 = vmatpush2.msra.mxu0 0.0
    %1527 = vmatprep.subr.mxu0 0.0
    %1528 = vmatpush2.msra.mxu0 0.0
    %1529 = vmatprep.subr.mxu0 0.0
    %1530 = vmatpush2.msra.mxu0 0.0
    %1531 = vmatprep.subr.mxu0 0.0
    %1532 = vmatpush2.msra.mxu0 0.0
    %1533 = vmatprep.subr.mxu0 0.0
    %1534 = vmatpush2.msra.mxu0 0.0
    %1535 = vmatprep.subr.mxu0 0.0
    %1536 = vmatpush2.msra.mxu0 0.0
    %1537 = vmatprep.subr.mxu0 0.0
    %1538 = vmatpush2.msra.mxu0 0.0
    %1539 = vmatprep.mubr.f32.mxu0 0.0
    %1540 = vmatmul.mubr.f32.gmra.mxu0 %v1397
    %v1541 = vpop.f32.mrf.mxu0
    %v1542 = vadd.f32 0.0, %v1541
    %v1543 = vpop.f32.mrf.mxu0
    %v1544 = vadd.f32 0.0, %v1543
    %1545 = vdwg.mxu0
    %v1546 = vadd.f32 %v1400, %v1471
    %v1547 = vadd.f32 %v1401, %v1473
    %v1548 = vadd.f32 %v1402, %v1542
    %v1549 = vadd.f32 %v1403, %v1544
    %v1550 = vmul.f32 %v1546, 0.5
    %v1551 = vtanh.pop %v1550
    %v1552 = vadd.f32 %v1551, 1.0
    %v1553 = vmul.f32 %v1552, 0.5
    %v1554 = vmul.f32 %v1547, 0.5
    %v1555 = vtanh.pop %v1554
    %v1556 = vadd.f32 %v1555, 1.0
    %v1557 = vmul.f32 %v1556, 0.5
    %v1558 = vtanh.pop %v1548
    %v1559 = vmul.f32 %v1549, 0.5
    %v1560 = vtanh.pop %v1559
    %v1561 = vadd.f32 %v1560, 1.0
    %v1562 = vmul.f32 %v1561, 0.5
    %v1563 = vmul.f32 %v1557, %v1398
    %v1564 = vmul.f32 %v1553, %v1558
    %v1565 = vadd.f32 %v1563, %v1564
    %v1566 = vtanh.pop %v1565
    %v1567 = vmul.f32 %v1562, %v1566
    %s1568 = sadd.s32 %s489, 5
    %v1569 = vstv %s1568
    %vm1570 = vcmp.gt.s32.totalorder %v424, %v1569
    %v1571 = vsel %vm1570, 1, 0
    %1572 = vset.pattern.permute.xlu0 0
    %1573 = vperm.xlu0 %1572, %v1571
    %v1574 = vpop.permute.xlu0 %1573
    %vm1575 = vcmp.eq.s32.totalorder %v1574, 1
    %v1576 = vsel %vm1575, %v1567, 0.0
    %s1577 = scalar_lea.vmem [#allocation11], 40
    %1578 = vst [vmem:[%s1577] sm:$0xff] %v1576
    %v1579 = vsel %vm1575, %v1567, %v1397
    %v1580 = vsel %vm1575, %v1565, %v1398
    %s1581 = scalar_lea.vmem [#allocation2], 192
    %v1582 = vld [vmem:[%s1581] sm:$0xff]
    %v1583 = vld [vmem:[%s1581 + $0x8] sm:$0xff]
    %v1584 = vld [vmem:[%s1581 + $0x10] sm:$0xff]
    %v1585 = vld [vmem:[%s1581 + $0x18] sm:$0xff]
    %1586 = vmatprep.subr.mxu0 %v486
    %1587 = vmatpush1.msra.mxu0 %v485
    %1588 = vmatprep.subr.mxu0 %v482
    %1589 = vmatpush1.msra.mxu0 %v481
    %1590 = vmatprep.subr.mxu0 %v478
    %1591 = vmatpush1.msra.mxu0 %v477
    %1592 = vmatprep.subr.mxu0 %v474
    %1593 = vmatpush1.msra.mxu0 %v473
    %1594 = vmatprep.subr.mxu0 %v470
    %1595 = vmatpush1.msra.mxu0 %v469
    %1596 = vmatprep.subr.mxu0 %v466
    %1597 = vmatpush1.msra.mxu0 %v465
    %1598 = vmatprep.subr.mxu0 %v462
    %1599 = vmatpush1.msra.mxu0 %v461
    %1600 = vmatprep.subr.mxu0 %v458
    %1601 = vmatpush1.msra.mxu0 %v457
    %1602 = vmatprep.subr.mxu0 %v454
    %1603 = vmatpush1.msra.mxu0 %v453
    %1604 = vmatprep.subr.mxu0 %v450
    %1605 = vmatpush1.msra.mxu0 %v449
    %1606 = vmatprep.subr.mxu0 %v446
    %1607 = vmatpush1.msra.mxu0 %v445
    %1608 = vmatprep.subr.mxu0 %v442
    %1609 = vmatpush1.msra.mxu0 %v441
    %1610 = vmatprep.subr.mxu0 %v438
    %1611 = vmatpush1.msra.mxu0 %v437
    %1612 = vmatprep.subr.mxu0 %v434
    %1613 = vmatpush1.msra.mxu0 %v433
    %1614 = vmatprep.subr.mxu0 %v430
    %1615 = vmatpush1.msra.mxu0 %v429
    %1616 = vmatprep.subr.mxu0 %v426
    %1617 = vmatpush1.msra.mxu0 %v425
    %1618 = vmatprep.subr.mxu0 0.0
    %1619 = vmatpush2.msra.mxu0 0.0
    %1620 = vmatprep.subr.mxu0 0.0
    %1621 = vmatpush2.msra.mxu0 0.0
    %1622 = vmatprep.subr.mxu0 0.0
    %1623 = vmatpush2.msra.mxu0 0.0
    %1624 = vmatprep.subr.mxu0 0.0
    %1625 = vmatpush2.msra.mxu0 0.0
    %1626 = vmatprep.subr.mxu0 0.0
    %1627 = vmatpush2.msra.mxu0 0.0
    %1628 = vmatprep.subr.mxu0 0.0
    %1629 = vmatpush2.msra.mxu0 0.0
    %1630 = vmatprep.subr.mxu0 0.0
    %1631 = vmatpush2.msra.mxu0 0.0
    %1632 = vmatprep.subr.mxu0 0.0
    %1633 = vmatpush2.msra.mxu0 0.0
    %1634 = vmatprep.subr.mxu0 0.0
    %1635 = vmatpush2.msra.mxu0 0.0
    %1636 = vmatprep.subr.mxu0 0.0
    %1637 = vmatpush2.msra.mxu0 0.0
    %1638 = vmatprep.subr.mxu0 0.0
    %1639 = vmatpush2.msra.mxu0 0.0
    %1640 = vmatprep.subr.mxu0 0.0
    %1641 = vmatpush2.msra.mxu0 0.0
    %1642 = vmatprep.subr.mxu0 0.0
    %1643 = vmatpush2.msra.mxu0 0.0
    %1644 = vmatprep.subr.mxu0 0.0
    %1645 = vmatpush2.msra.mxu0 0.0
    %1646 = vmatprep.subr.mxu0 0.0
    %1647 = vmatpush2.msra.mxu0 0.0
    %1648 = vmatprep.subr.mxu0 0.0
    %1649 = vmatpush2.msra.mxu0 0.0
    %1650 = vmatprep.mubr.f32.mxu0 0.0
    %1651 = vmatmul.mubr.f32.gmra.mxu0 %v1579
    %v1652 = vpop.f32.mrf.mxu0
    %v1653 = vadd.f32 0.0, %v1652
    %v1654 = vpop.f32.mrf.mxu0
    %v1655 = vadd.f32 0.0, %v1654
    %1656 = vdwg.mxu0
    %1657 = vmatprep.subr.mxu0 %v488
    %1658 = vmatpush1.msra.mxu0 %v487
    %1659 = vmatprep.subr.mxu0 %v484
    %1660 = vmatpush1.msra.mxu0 %v483
    %1661 = vmatprep.subr.mxu0 %v480
    %1662 = vmatpush1.msra.mxu0 %v479
    %1663 = vmatprep.subr.mxu0 %v476
    %1664 = vmatpush1.msra.mxu0 %v475
    %1665 = vmatprep.subr.mxu0 %v472
    %1666 = vmatpush1.msra.mxu0 %v471
    %1667 = vmatprep.subr.mxu0 %v468
    %1668 = vmatpush1.msra.mxu0 %v467
    %1669 = vmatprep.subr.mxu0 %v464
    %1670 = vmatpush1.msra.mxu0 %v463
    %1671 = vmatprep.subr.mxu0 %v460
    %1672 = vmatpush1.msra.mxu0 %v459
    %1673 = vmatprep.subr.mxu0 %v456
    %1674 = vmatpush1.msra.mxu0 %v455
    %1675 = vmatprep.subr.mxu0 %v452
    %1676 = vmatpush1.msra.mxu0 %v451
    %1677 = vmatprep.subr.mxu0 %v448
    %1678 = vmatpush1.msra.mxu0 %v447
    %1679 = vmatprep.subr.mxu0 %v444
    %1680 = vmatpush1.msra.mxu0 %v443
    %1681 = vmatprep.subr.mxu0 %v440
    %1682 = vmatpush1.msra.mxu0 %v439
    %1683 = vmatprep.subr.mxu0 %v436
    %1684 = vmatpush1.msra.mxu0 %v435
    %1685 = vmatprep.subr.mxu0 %v432
    %1686 = vmatpush1.msra.mxu0 %v431
    %1687 = vmatprep.subr.mxu0 %v428
    %1688 = vmatpush1.msra.mxu0 %v427
    %1689 = vmatprep.subr.mxu0 0.0
    %1690 = vmatpush2.msra.mxu0 0.0
    %1691 = vmatprep.subr.mxu0 0.0
    %1692 = vmatpush2.msra.mxu0 0.0
    %1693 = vmatprep.subr.mxu0 0.0
    %1694 = vmatpush2.msra.mxu0 0.0
    %1695 = vmatprep.subr.mxu0 0.0
    %1696 = vmatpush2.msra.mxu0 0.0
    %1697 = vmatprep.subr.mxu0 0.0
    %1698 = vmatpush2.msra.mxu0 0.0
    %1699 = vmatprep.subr.mxu0 0.0
    %1700 = vmatpush2.msra.mxu0 0.0
    %1701 = vmatprep.subr.mxu0 0.0
    %1702 = vmatpush2.msra.mxu0 0.0
    %1703 = vmatprep.subr.mxu0 0.0
    %1704 = vmatpush2.msra.mxu0 0.0
    %1705 = vmatprep.subr.mxu0 0.0
    %1706 = vmatpush2.msra.mxu0 0.0
    %1707 = vmatprep.subr.mxu0 0.0
    %1708 = vmatpush2.msra.mxu0 0.0
    %1709 = vmatprep.subr.mxu0 0.0
    %1710 = vmatpush2.msra.mxu0 0.0
    %1711 = vmatprep.subr.mxu0 0.0
    %1712 = vmatpush2.msra.mxu0 0.0
    %1713 = vmatprep.subr.mxu0 0.0
    %1714 = vmatpush2.msra.mxu0 0.0
    %1715 = vmatprep.subr.mxu0 0.0
    %1716 = vmatpush2.msra.mxu0 0.0
    %1717 = vmatprep.subr.mxu0 0.0
    %1718 = vmatpush2.msra.mxu0 0.0
    %1719 = vmatprep.subr.mxu0 0.0
    %1720 = vmatpush2.msra.mxu0 0.0
    %1721 = vmatprep.mubr.f32.mxu0 0.0
    %1722 = vmatmul.mubr.f32.gmra.mxu0 %v1579
    %v1723 = vpop.f32.mrf.mxu0
    %v1724 = vadd.f32 0.0, %v1723
    %v1725 = vpop.f32.mrf.mxu0
    %v1726 = vadd.f32 0.0, %v1725
    %1727 = vdwg.mxu0
    %v1728 = vadd.f32 %v1582, %v1653
    %v1729 = vadd.f32 %v1583, %v1655
    %v1730 = vadd.f32 %v1584, %v1724
    %v1731 = vadd.f32 %v1585, %v1726
    %v1732 = vmul.f32 %v1728, 0.5
    %v1733 = vtanh.pop %v1732
    %v1734 = vadd.f32 %v1733, 1.0
    %v1735 = vmul.f32 %v1734, 0.5
    %v1736 = vmul.f32 %v1729, 0.5
    %v1737 = vtanh.pop %v1736
    %v1738 = vadd.f32 %v1737, 1.0
    %v1739 = vmul.f32 %v1738, 0.5
    %v1740 = vtanh.pop %v1730
    %v1741 = vmul.f32 %v1731, 0.5
    %v1742 = vtanh.pop %v1741
    %v1743 = vadd.f32 %v1742, 1.0
    %v1744 = vmul.f32 %v1743, 0.5
    %v1745 = vmul.f32 %v1739, %v1580
    %v1746 = vmul.f32 %v1735, %v1740
    %v1747 = vadd.f32 %v1745, %v1746
    %v1748 = vtanh.pop %v1747
    %v1749 = vmul.f32 %v1744, %v1748
    %s1750 = sadd.s32 %s489, 6
    %v1751 = vstv %s1750
    %vm1752 = vcmp.gt.s32.totalorder %v424, %v1751
    %v1753 = vsel %vm1752, 1, 0
    %1754 = vset.pattern.permute.xlu0 0
    %1755 = vperm.xlu0 %1754, %v1753
    %v1756 = vpop.permute.xlu0 %1755
    %vm1757 = vcmp.eq.s32.totalorder %v1756, 1
    %v1758 = vsel %vm1757, %v1749, 0.0
    %s1759 = scalar_lea.vmem [#allocation11], 48
    %1760 = vst [vmem:[%s1759] sm:$0xff] %v1758
    %v1761 = vsel %vm1757, %v1749, %v1579
    %v1762 = vsel %vm1757, %v1747, %v1580
    %s1763 = scalar_lea.vmem [#allocation2], 224
    %v1764 = vld [vmem:[%s1763] sm:$0xff]
    %v1765 = vld [vmem:[%s1763 + $0x8] sm:$0xff]
    %v1766 = vld [vmem:[%s1763 + $0x10] sm:$0xff]
    %v1767 = vld [vmem:[%s1763 + $0x18] sm:$0xff]
    %1768 = vmatprep.subr.mxu0 %v486
    %1769 = vmatpush1.msra.mxu0 %v485
    %1770 = vmatprep.subr.mxu0 %v482
    %1771 = vmatpush1.msra.mxu0 %v481
    %1772 = vmatprep.subr.mxu0 %v478
    %1773 = vmatpush1.msra.mxu0 %v477
    %1774 = vmatprep.subr.mxu0 %v474
    %1775 = vmatpush1.msra.mxu0 %v473
    %1776 = vmatprep.subr.mxu0 %v470
    %1777 = vmatpush1.msra.mxu0 %v469
    %1778 = vmatprep.subr.mxu0 %v466
    %1779 = vmatpush1.msra.mxu0 %v465
    %1780 = vmatprep.subr.mxu0 %v462
    %1781 = vmatpush1.msra.mxu0 %v461
    %1782 = vmatprep.subr.mxu0 %v458
    %1783 = vmatpush1.msra.mxu0 %v457
    %1784 = vmatprep.subr.mxu0 %v454
    %1785 = vmatpush1.msra.mxu0 %v453
    %1786 = vmatprep.subr.mxu0 %v450
    %1787 = vmatpush1.msra.mxu0 %v449
    %1788 = vmatprep.subr.mxu0 %v446
    %1789 = vmatpush1.msra.mxu0 %v445
    %1790 = vmatprep.subr.mxu0 %v442
    %1791 = vmatpush1.msra.mxu0 %v441
    %1792 = vmatprep.subr.mxu0 %v438
    %1793 = vmatpush1.msra.mxu0 %v437
    %1794 = vmatprep.subr.mxu0 %v434
    %1795 = vmatpush1.msra.mxu0 %v433
    %1796 = vmatprep.subr.mxu0 %v430
    %1797 = vmatpush1.msra.mxu0 %v429
    %1798 = vmatprep.subr.mxu0 %v426
    %1799 = vmatpush1.msra.mxu0 %v425
    %1800 = vmatprep.subr.mxu0 0.0
    %1801 = vmatpush2.msra.mxu0 0.0
    %1802 = vmatprep.subr.mxu0 0.0
    %1803 = vmatpush2.msra.mxu0 0.0
    %1804 = vmatprep.subr.mxu0 0.0
    %1805 = vmatpush2.msra.mxu0 0.0
    %1806 = vmatprep.subr.mxu0 0.0
    %1807 = vmatpush2.msra.mxu0 0.0
    %1808 = vmatprep.subr.mxu0 0.0
    %1809 = vmatpush2.msra.mxu0 0.0
    %1810 = vmatprep.subr.mxu0 0.0
    %1811 = vmatpush2.msra.mxu0 0.0
    %1812 = vmatprep.subr.mxu0 0.0
    %1813 = vmatpush2.msra.mxu0 0.0
    %1814 = vmatprep.subr.mxu0 0.0
    %1815 = vmatpush2.msra.mxu0 0.0
    %1816 = vmatprep.subr.mxu0 0.0
    %1817 = vmatpush2.msra.mxu0 0.0
    %1818 = vmatprep.subr.mxu0 0.0
    %1819 = vmatpush2.msra.mxu0 0.0
    %1820 = vmatprep.subr.mxu0 0.0
    %1821 = vmatpush2.msra.mxu0 0.0
    %1822 = vmatprep.subr.mxu0 0.0
    %1823 = vmatpush2.msra.mxu0 0.0
    %1824 = vmatprep.subr.mxu0 0.0
    %1825 = vmatpush2.msra.mxu0 0.0
    %1826 = vmatprep.subr.mxu0 0.0
    %1827 = vmatpush2.msra.mxu0 0.0
    %1828 = vmatprep.subr.mxu0 0.0
    %1829 = vmatpush2.msra.mxu0 0.0
    %1830 = vmatprep.subr.mxu0 0.0
    %1831 = vmatpush2.msra.mxu0 0.0
    %1832 = vmatprep.mubr.f32.mxu0 0.0
    %1833 = vmatmul.mubr.f32.gmra.mxu0 %v1761
    %v1834 = vpop.f32.mrf.mxu0
    %v1835 = vadd.f32 0.0, %v1834
    %v1836 = vpop.f32.mrf.mxu0
    %v1837 = vadd.f32 0.0, %v1836
    %1838 = vdwg.mxu0
    %1839 = vmatprep.subr.mxu0 %v488
    %1840 = vmatpush1.msra.mxu0 %v487
    %1841 = vmatprep.subr.mxu0 %v484
    %1842 = vmatpush1.msra.mxu0 %v483
    %1843 = vmatprep.subr.mxu0 %v480
    %1844 = vmatpush1.msra.mxu0 %v479
    %1845 = vmatprep.subr.mxu0 %v476
    %1846 = vmatpush1.msra.mxu0 %v475
    %1847 = vmatprep.subr.mxu0 %v472
    %1848 = vmatpush1.msra.mxu0 %v471
    %1849 = vmatprep.subr.mxu0 %v468
    %1850 = vmatpush1.msra.mxu0 %v467
    %1851 = vmatprep.subr.mxu0 %v464
    %1852 = vmatpush1.msra.mxu0 %v463
    %1853 = vmatprep.subr.mxu0 %v460
    %1854 = vmatpush1.msra.mxu0 %v459
    %1855 = vmatprep.subr.mxu0 %v456
    %1856 = vmatpush1.msra.mxu0 %v455
    %1857 = vmatprep.subr.mxu0 %v452
    %1858 = vmatpush1.msra.mxu0 %v451
    %1859 = vmatprep.subr.mxu0 %v448
    %1860 = vmatpush1.msra.mxu0 %v447
    %1861 = vmatprep.subr.mxu0 %v444
    %1862 = vmatpush1.msra.mxu0 %v443
    %1863 = vmatprep.subr.mxu0 %v440
    %1864 = vmatpush1.msra.mxu0 %v439
    %1865 = vmatprep.subr.mxu0 %v436
    %1866 = vmatpush1.msra.mxu0 %v435
    %1867 = vmatprep.subr.mxu0 %v432
    %1868 = vmatpush1.msra.mxu0 %v431
    %1869 = vmatprep.subr.mxu0 %v428
    %1870 = vmatpush1.msra.mxu0 %v427
    %1871 = vmatprep.subr.mxu0 0.0
    %1872 = vmatpush2.msra.mxu0 0.0
    %1873 = vmatprep.subr.mxu0 0.0
    %1874 = vmatpush2.msra.mxu0 0.0
    %1875 = vmatprep.subr.mxu0 0.0
    %1876 = vmatpush2.msra.mxu0 0.0
    %1877 = vmatprep.subr.mxu0 0.0
    %1878 = vmatpush2.msra.mxu0 0.0
    %1879 = vmatprep.subr.mxu0 0.0
    %1880 = vmatpush2.msra.mxu0 0.0
    %1881 = vmatprep.subr.mxu0 0.0
    %1882 = vmatpush2.msra.mxu0 0.0
    %1883 = vmatprep.subr.mxu0 0.0
    %1884 = vmatpush2.msra.mxu0 0.0
    %1885 = vmatprep.subr.mxu0 0.0
    %1886 = vmatpush2.msra.mxu0 0.0
    %1887 = vmatprep.subr.mxu0 0.0
    %1888 = vmatpush2.msra.mxu0 0.0
    %1889 = vmatprep.subr.mxu0 0.0
    %1890 = vmatpush2.msra.mxu0 0.0
    %1891 = vmatprep.subr.mxu0 0.0
    %1892 = vmatpush2.msra.mxu0 0.0
    %1893 = vmatprep.subr.mxu0 0.0
    %1894 = vmatpush2.msra.mxu0 0.0
    %1895 = vmatprep.subr.mxu0 0.0
    %1896 = vmatpush2.msra.mxu0 0.0
    %1897 = vmatprep.subr.mxu0 0.0
    %1898 = vmatpush2.msra.mxu0 0.0
    %1899 = vmatprep.subr.mxu0 0.0
    %1900 = vmatpush2.msra.mxu0 0.0
    %1901 = vmatprep.subr.mxu0 0.0
    %1902 = vmatpush2.msra.mxu0 0.0
    %1903 = vmatprep.mubr.f32.mxu0 0.0
    %1904 = vmatmul.mubr.f32.gmra.mxu0 %v1761
    %v1905 = vpop.f32.mrf.mxu0
    %v1906 = vadd.f32 0.0, %v1905
    %v1907 = vpop.f32.mrf.mxu0
    %v1908 = vadd.f32 0.0, %v1907
    %1909 = vdwg.mxu0
    %v1910 = vadd.f32 %v1764, %v1835
    %v1911 = vadd.f32 %v1765, %v1837
    %v1912 = vadd.f32 %v1766, %v1906
    %v1913 = vadd.f32 %v1767, %v1908
    %v1914 = vmul.f32 %v1910, 0.5
    %v1915 = vtanh.pop %v1914
    %v1916 = vadd.f32 %v1915, 1.0
    %v1917 = vmul.f32 %v1916, 0.5
    %v1918 = vmul.f32 %v1911, 0.5
    %v1919 = vtanh.pop %v1918
    %v1920 = vadd.f32 %v1919, 1.0
    %v1921 = vmul.f32 %v1920, 0.5
    %v1922 = vtanh.pop %v1912
    %v1923 = vmul.f32 %v1913, 0.5
    %v1924 = vtanh.pop %v1923
    %v1925 = vadd.f32 %v1924, 1.0
    %v1926 = vmul.f32 %v1925, 0.5
    %v1927 = vmul.f32 %v1921, %v1762
    %v1928 = vmul.f32 %v1917, %v1922
    %v1929 = vadd.f32 %v1927, %v1928
    %v1930 = vtanh.pop %v1929
    %v1931 = vmul.f32 %v1926, %v1930
    %s1932 = sadd.s32 %s489, 7
    %v1933 = vstv %s1932
    %vm1934 = vcmp.gt.s32.totalorder %v424, %v1933
    %v1935 = vsel %vm1934, 1, 0
    %1936 = vset.pattern.permute.xlu0 0
    %1937 = vperm.xlu0 %1936, %v1935
    %v1938 = vpop.permute.xlu0 %1937
    %vm1939 = vcmp.eq.s32.totalorder %v1938, 1
    %v1940 = vsel %vm1939, %v1931, 0.0
    %s1941 = scalar_lea.vmem [#allocation11], 56
    %1942 = vst [vmem:[%s1941] sm:$0xff] %v1940
    %v1943 = vsel %vm1939, %v1931, %v1761
    %v1944 = vsel %vm1939, %v1929, %v1762
    %1945 = vst [vmem:[#allocation3] sm:$0xff] %v1943
    %1946 = vst [vmem:[#allocation4] sm:$0xff] %v1944
    // Predicated region
    $region38: #{tpu_custom_call.1} parent=1 // pred_check
      %p1947 = pneg %p66
    $region39: #{tpu_custom_call.1} parent=1 // pred_check_branch
      %1949 = sbr.rel (%p1947) target = $region41
    $region40: #{tpu_custom_call.1} parent=1 // pred_region
      %1950 = vst [vmem:[#allocation12] sm:$0xff] %v1943
      %1951 = vst [vmem:[#allocation14] sm:$0xff] %v1944
    $region41: #{tpu_custom_call.1} parent=1 // pred_fallthru
      _
    // Predicated region
    $region42: #{tpu_custom_call.1} parent=1 // pred_check
      _
    $region43: #{tpu_custom_call.1} parent=1 // pred_check_branch
      %1953 = sbr.rel (0) target = $region45
    $region44: #{tpu_custom_call.1} parent=1 // pred_region
      %s1955 = ssub.s32 1024, 1024
      %1956 = vsyncadd [#allocation7], %s1955
      %s1957 = sshll.u32 [#allocation11], 4
      %s1958 = int_to_ptr.vmem [resolvable:$true] %s1957
      %1963 = dma.vmem_to_hbm [thread:$0]  %s1958, 1024, %s5, [#allocation7], 128, 128, 8
    $region45: #{tpu_custom_call.1} parent=1 // pred_fallthru
      _
    // Predicated region
    $region46: #{tpu_custom_call.1} parent=1 // pred_check
      _
    $region47: #{tpu_custom_call.1} parent=1 // pred_check_branch
      %1965 = sbr.rel (0) target = $region49
    $region48: #{tpu_custom_call.1} parent=1 // pred_region
      %s1967 = ssub.s32 128, 128
      %1968 = vsyncadd [#allocation13], %s1967
      %s1970 = sshll.u32 [#allocation12], 4
      %s1971 = int_to_ptr.vmem [resolvable:$true] %s1970
      %1973 = dma.vmem_to_hbm [thread:$0]  %s1971, 128, %s6, [#allocation13]
    $region49: #{tpu_custom_call.1} parent=1 // pred_fallthru
      _
    // Predicated region
    $region50: #{tpu_custom_call.1} parent=1 // pred_check
      _
    $region51: #{tpu_custom_call.1} parent=1 // pred_check_branch
      %1975 = sbr.rel (0) target = $region53
    $region52: #{tpu_custom_call.1} parent=1 // pred_region
      %s1977 = ssub.s32 128, 128
      %1978 = vsyncadd [#allocation13], %s1977
      %s1980 = sshll.u32 [#allocation14], 4
      %s1981 = int_to_ptr.vmem [resolvable:$true] %s1980
      %1983 = dma.vmem_to_hbm [thread:$0]  %s1981, 128, %s7, [#allocation13]
    $region53: #{tpu_custom_call.1} parent=1 // pred_fallthru
      _
    // Predicated region
    $region54: #{tpu_custom_call.1} parent=1 // pred_check
      _
    $region55: #{tpu_custom_call.1} parent=1 // pred_check_branch
      %1985 = sbr.rel (0) target = $region57
    $region56: #{tpu_custom_call.1} parent=1 // pred_region
      %1986 = dma.done [#allocation7], 1024
    $region57: #{tpu_custom_call.1} parent=1 // pred_fallthru
      _
    // Predicated region
    $region58: #{tpu_custom_call.1} parent=1 // pred_check
      _
    $region59: #{tpu_custom_call.1} parent=1 // pred_check_branch
      %1988 = sbr.rel (0) target = $region61
    $region60: #{tpu_custom_call.1} parent=1 // pred_region
      %1989 = dma.done [#allocation13], 128
    $region61: #{tpu_custom_call.1} parent=1 // pred_fallthru
      _
    // Predicated region
    $region62: #{tpu_custom_call.1} parent=1 // pred_check
      _
    $region63: #{tpu_custom_call.1} parent=1 // pred_check_branch
      %1991 = sbr.rel (0) target = $region65
    $region64: #{tpu_custom_call.1} parent=1 // pred_region
      %1992 = dma.done [#allocation13], 128
    $region65: #{tpu_custom_call.1} parent=1 // pred_fallthru
      _
    %1993 = vsyncpa [#allocation6], 1
    %1994 = vsyncpa [#allocation9], 1
    %1995 = vsyncpa [#allocation7], 1
    %1996 = vsyncpa [#allocation13], 1

</llo_original>
